<compile_context>
chip_gen: v6e
topology: v6e:2x2x1
jax: 0.10.0
libtpu: 0.0.40
codegen_flags: <defaults>
</compile_context>

<pallas_src>
import math

import jax
import jax.numpy as jnp
from jax import lax
from jax.experimental import pallas as pl
from jax.experimental.pallas import tpu as pltpu

_VMEM_LIMIT = 48 * 1024 * 1024  # explicit cap, safe on v7x (64 MiB physical)


# ---------------------------------------------------------------------------
# helpers
# ---------------------------------------------------------------------------

def _pick_tile(dim, target, align):
    """Largest tile <= target that divides dim and is `align`-aligned, else dim."""
    if dim <= target:
        return dim
    t = (target // align) * align
    while t >= align:
        if dim % t == 0:
            return t
        t -= align
    return dim


# ---------------------------------------------------------------------------
# Tiled linear kernel:  y = x @ w.T + b   (w in PyTorch (out, in) layout)
# ---------------------------------------------------------------------------

def _make_linear_kernel(use_bf16):
    mxu_dtype = jnp.bfloat16 if use_bf16 else jnp.float32

    def kernel(x_ref, w_ref, b_ref, o_ref, acc_ref):
        @pl.when(pl.program_id(2) == 0)
        def _():
            # bias initializes the accumulator; flush stays a pure cast/store.
            acc_ref[...] = jnp.broadcast_to(b_ref[...], acc_ref.shape)

        x = x_ref[...].astype(mxu_dtype)
        w = w_ref[...].astype(mxu_dtype)
        # contract the K axis of both operands: x (tm, tk) . w (tn, tk)^T
        acc_ref[...] += lax.dot_general(
            x, w, (((1,), (1,)), ((), ())),
            preferred_element_type=jnp.float32)

        @pl.when(pl.program_id(2) == pl.num_programs(2) - 1)
        def _():
            o_ref[...] = acc_ref[...].astype(o_ref.dtype)

    return kernel


def linear_pallas(x, w, b, *, tm=512, tn=512, tk=512, use_bf16=False):
    """F.linear: x:(M,K), w:(N,K), b:(N,) -> (M,N) f32."""
    M, K = x.shape
    N = w.shape[0]
    tm = _pick_tile(M, tm, 8)
    tn = _pick_tile(N, tn, 128)
    tk = _pick_tile(K, tk, 128)
    b2 = b.reshape(1, N)
    return pl.pallas_call(
        _make_linear_kernel(use_bf16),
        out_shape=jax.ShapeDtypeStruct((M, N), jnp.float32),
        grid=(M // tm, N // tn, K // tk),
        in_specs=[
            pl.BlockSpec((tm, tk), lambda i, j, k: (i, k)),
            pl.BlockSpec((tn, tk), lambda i, j, k: (j, k)),   # (out, in) layout
            pl.BlockSpec((1, tn), lambda i, j, k: (0, j)),
        ],
        out_specs=pl.BlockSpec((tm, tn), lambda i, j, k: (i, j)),
        scratch_shapes=[pltpu.VMEM((tm, tn), jnp.float32)],
        compiler_params=pltpu.CompilerParams(
            dimension_semantics=("parallel", "parallel", "arbitrary"),
            vmem_limit_bytes=_VMEM_LIMIT),
    )(x, w, b2)


# ---------------------------------------------------------------------------
# Attention kernel: block of (batch, head) pairs x block of tgt rows per step
# ---------------------------------------------------------------------------

def _make_attn_kernel(num_heads, scaling, use_bf16):
    inv_heads = 1.0 / float(num_heads)
    mxu_dtype = jnp.bfloat16 if use_bf16 else jnp.float32

    def kernel(q_ref, k_ref, v_ref, o_ref, w_ref):
        # q scaled in-kernel (same order as PyTorch: after projection, before bmm)
        q = q_ref[...] * scaling                                 # (bblk, tL, Dh)
        k = k_ref[...]                                           # (bblk, S,  Dh)
        v = v_ref[...]                                           # (bblk, S,  Dh)

        # scores: contract head dim directly (no explicit k transpose)
        s = lax.dot_general(
            q.astype(mxu_dtype), k.astype(mxu_dtype),
            (((2,), (2,)), ((0,), (0,))),
            preferred_element_type=jnp.float32)                  # (bblk, tL, S)

        # exact softmax pieces in f32 (matches F.softmax(attn.float(), dim=-1))
        m = jnp.max(s, axis=-1, keepdims=True)
        e = jnp.exp(s - m)                                       # (bblk, tL, S)
        denom = jnp.sum(e, axis=-1, keepdims=True)               # (bblk, tL, 1)
        recip = 1.0 / denom                                      # exact divide

        # deferred normalization: normalize the small (tL, Dh) result, not e
        pv = lax.dot_general(
            e.astype(mxu_dtype), v.astype(mxu_dtype),
            (((2,), (1,)), ((0,), (0,))),
            preferred_element_type=jnp.float32)                  # (bblk, tL, Dh)
        o_ref[...] = (pv * recip).astype(o_ref.dtype)

        # attn_weights.sum(dim=tgt)/num_heads contribution for this tgt tile:
        # contract tL between recip (bblk,tL,1) and e (bblk,tL,S) on the MXU.
        wc = lax.dot_general(
            recip, e, (((1,), (1,)), ((0,), (0,))),
            preferred_element_type=jnp.float32)                  # (bblk, 1, S)

        @pl.when(pl.program_id(1) == 0)
        def _():
            w_ref[...] = jnp.zeros_like(w_ref)
        w_ref[...] += wc * inv_heads

    return kernel


def attention_pallas(q, k, v, num_heads, scaling, *, use_bf16=False):
    """q:(BH,L,Dh), k/v:(BH,S,Dh) f32. Returns ((BH,L,Dh), (BH,S)) f32."""
    BH, L, Dh = q.shape
    S = k.shape[1]

    # >= 2 grid steps over the (batch,head) axis when possible (megacore).
    bblk = _pick_tile(BH, max(1, min(8, BH // 2)), 1)
    # tgt tile sized so the f32 score block (bblk, tL, S) stays ~<= 6 MiB.
    score_budget = 6 * 1024 * 1024
    max_tl = max(8, ((score_budget // max(1, bblk * S * 4)) // 8) * 8)
    tL = _pick_tile(L, min(512, max_tl), 8)

    attn, wsum = pl.pallas_call(
        _make_attn_kernel(num_heads, scaling, use_bf16),
        out_shape=(
            jax.ShapeDtypeStruct((BH, L, Dh), jnp.float32),
            jax.ShapeDtypeStruct((BH, 1, S), jnp.float32),
        ),
        grid=(BH // bblk, L // tL),
        in_specs=[
            pl.BlockSpec((bblk, tL, Dh), lambda i, l: (i, l, 0)),
            pl.BlockSpec((bblk, S, Dh), lambda i, l: (i, 0, 0)),
            pl.BlockSpec((bblk, S, Dh), lambda i, l: (i, 0, 0)),
        ],
        out_specs=(
            pl.BlockSpec((bblk, tL, Dh), lambda i, l: (i, l, 0)),
            # constant across l -> resident accumulator over the tgt tiles
            pl.BlockSpec((bblk, 1, S), lambda i, l: (i, 0, 0)),
        ),
        compiler_params=pltpu.CompilerParams(
            dimension_semantics=("parallel", "arbitrary"),
            vmem_limit_bytes=_VMEM_LIMIT),
    )(q, k, v)
    return attn, wsum.reshape(BH, S)


# ---------------------------------------------------------------------------
# Layout glue (XLA relayouts; head-dim lane slices are not expressible as
# (8,128)-legal BlockSpecs, so these stay outside the kernels)
# ---------------------------------------------------------------------------

def _to_heads(x2d, seq, bsz, num_heads, head_dim):
    # (seq*bsz, E) -> (bsz*num_heads, seq, head_dim)
    return (x2d.reshape(seq, bsz, num_heads, head_dim)
                .transpose(1, 2, 0, 3)
                .reshape(bsz * num_heads, seq, head_dim))


def _split_to_heads(fused2d, n, seq, bsz, num_heads, head_dim):
    # (seq*bsz, n*E) -> (n, bsz*num_heads, seq, head_dim) in one relayout pass
    return (fused2d.reshape(seq, bsz, n, num_heads, head_dim)
                   .transpose(2, 1, 3, 0, 4)
                   .reshape(n, bsz * num_heads, seq, head_dim))


def _from_heads(attn_bh, tgt, bsz, num_heads, head_dim):
    # (bsz*num_heads, tgt, head_dim) -> (tgt*bsz, E)
    return (attn_bh.reshape(bsz, num_heads, tgt, head_dim)
                   .transpose(2, 0, 1, 3)
                   .reshape(tgt * bsz, num_heads * head_dim))


# ---------------------------------------------------------------------------
# Module forward
# ---------------------------------------------------------------------------

def multihead_attention_forward(query, key, value, params, num_heads,
                                use_bf16=False):
    L, B, E = query.shape
    S = key.shape[0]
    H = num_heads
    Dh = E // H
    scaling = Dh ** (-0.5)

    w_in = params["in_proj_weight"]        # (3E, E)  PyTorch (out, in) layout
    b_in = params["in_proj_bias"]          # (3E,)
    w_out = params["out_proj_weight"]      # (E, E)
    b_out = params["out_proj_bias"]        # (E,)

    xq = query.reshape(L * B, E)

    # NOTE: object-identity dispatch only picks the fused (faster) path; the
    # unfused path below is equally correct for distinct-but-equal arrays.
    if (key is query) and (value is query):
        # Self-attention: fused (L*B, 3E) projection, one head-split relayout.
        qkv = linear_pallas(xq, w_in, b_in, use_bf16=use_bf16)      # (L*B, 3E)
        qkvh = _split_to_heads(qkv, 3, L, B, H, Dh)
        qh, kh, vh = qkvh[0], qkvh[1], qkvh[2]
        Sk = L
    else:
        q2 = linear_pallas(xq, w_in[:E], b_in[:E], use_bf16=use_bf16)
        qh = _to_heads(q2, L, B, H, Dh)
        xk = key.reshape(S * B, E)
        if key is value:
            # Cross-attention with shared memory: fused (S*B, 2E) K/V projection.
            kv = linear_pallas(xk, w_in[E:], b_in[E:], use_bf16=use_bf16)
            kvh = _split_to_heads(kv, 2, S, B, H, Dh)
            kh, vh = kvh[0], kvh[1]
        else:
            k2 = linear_pallas(xk, w_in[E:2 * E], b_in[E:2 * E],
                               use_bf16=use_bf16)
            v2 = linear_pallas(value.reshape(S * B, E),
                               w_in[2 * E:], b_in[2 * E:], use_bf16=use_bf16)
            kh = _to_heads(k2, S, B, H, Dh)
            vh = _to_heads(v2, S, B, H, Dh)
        Sk = S

    attn_bh, w_sum = attention_pallas(qh, kh, vh, H, scaling,
                                      use_bf16=use_bf16)

    attn2 = _from_heads(attn_bh, L, B, H, Dh)                       # (L*B, E)
    out = linear_pallas(attn2, w_out, b_out,
                        use_bf16=use_bf16).reshape(L, B, E)
    # w_sum matches attn_weights.sum(dim=1)/num_heads : (bsz*num_heads, src_len)
    return out, w_sum


# ---------------------------------------------------------------------------
# Pure-JAX reference (f32, HIGHEST precision) for a correctness self-check
# ---------------------------------------------------------------------------

def reference_forward(query, key, value, params, num_heads):
    L, B, E = query.shape
    S = key.shape[0]
    H = num_heads
    Dh = E // H
    scaling = Dh ** (-0.5)
    hp = lax.Precision.HIGHEST
    w_in, b_in = params["in_proj_weight"], params["in_proj_bias"]

    def lin(x, w, b):
        return jnp.einsum("...k,nk->...n", x, w, precision=hp) + b

    q = lin(query, w_in[:E], b_in[:E]) * scaling
    k = lin(key, w_in[E:2 * E], b_in[E:2 * E])
    v = lin(value, w_in[2 * E:], b_in[2 * E:])
    q = q.reshape(L, B * H, Dh).transpose(1, 0, 2)
    k = k.reshape(S, B * H, Dh).transpose(1, 0, 2)
    v = v.reshape(S, B * H, Dh).transpose(1, 0, 2)
    aw = jnp.einsum("bld,bsd->bls", q, k, precision=hp)
    aw = jax.nn.softmax(aw, axis=-1)
    attn = jnp.einsum("bls,bsd->bld", aw, v, precision=hp)
    attn = attn.transpose(1, 0, 2).reshape(L, B, E)
    out = lin(attn, params["out_proj_weight"], params["out_proj_bias"])
    return out, aw.sum(axis=1) / H


# ---------------------------------------------------------------------------
# Deterministic parameter init (xavier_uniform weights, zero biases)
# ---------------------------------------------------------------------------

def xavier_uniform(key, shape):
    fan_out, fan_in = shape
    bound = math.sqrt(6.0 / (fan_in + fan_out))
    return jax.random.uniform(key, shape, jnp.float32, -bound, bound)


def init_params(key, embed_dim):
    k1, k2 = jax.random.split(key)
    return {
        "in_proj_weight": xavier_uniform(k1, (3 * embed_dim, embed_dim)),
        "in_proj_bias": jnp.zeros((3 * embed_dim,), jnp.float32),
        "out_proj_weight": xavier_uniform(k2, (embed_dim, embed_dim)),
        "out_proj_bias": jnp.zeros((embed_dim,), jnp.float32),
    }


if __name__ == "__main__":
    embed_dim = 32
    num_heads = 4
    tgt_len = 8
    src_len = 16
    bsz = 2

    root = jax.random.PRNGKey(0)
    kp, kx, km = jax.random.split(root, 3)

    params = init_params(kp, embed_dim)
    x = jax.random.normal(kx, (tgt_len, bsz, embed_dim), jnp.float32)
    mem = jax.random.normal(km, (src_len, bsz, embed_dim), jnp.float32)

    # Self-attention (fused QKV path).
    self_fwd = jax.jit(
        lambda x, p: multihead_attention_forward(x, x, x, p, num_heads))
    attn, w_avg = self_fwd(x, params)
    jax.block_until_ready((attn, w_avg))
    assert attn.shape == (tgt_len, bsz, embed_dim)
    assert w_avg.shape == (bsz * num_heads, tgt_len)

    ref_attn, ref_w = reference_forward(x, x, x, params, num_heads)
    assert float(jnp.max(jnp.abs(attn - ref_attn))) < 1e-3
    assert float(jnp.max(jnp.abs(w_avg - ref_w))) < 1e-3

    # Cross-attention (key is value, different source length).
    cross_fwd = jax.jit(
        lambda q, m, p: multihead_attention_forward(q, m, m, p, num_heads))
    attn_c, w_avg_c = cross_fwd(x, mem, params)
    jax.block_until_ready((attn_c, w_avg_c))
    assert attn_c.shape == (tgt_len, bsz, embed_dim)
    assert w_avg_c.shape == (bsz * num_heads, src_len)

    ref_attn_c, ref_w_c = reference_forward(x, mem, mem, params, num_heads)
    assert float(jnp.max(jnp.abs(attn_c - ref_attn_c))) < 1e-3
    assert float(jnp.max(jnp.abs(w_avg_c - ref_w_c))) < 1e-3

    print("KERNEL_OK")
</pallas_src>

<mosaic_0001>
module attributes {stable_mosaic.version = 11 : i64} {
  func.func @kernel(%arg0: i32, %arg1: i32, %arg2: i32, %arg3: memref<16x32xf32, #tpu.memory_space<vmem>>, %arg4: memref<96x32xf32, #tpu.memory_space<vmem>>, %arg5: memref<1x96xf32, #tpu.memory_space<vmem>>, %arg6: memref<16x96xf32, #tpu.memory_space<vmem>>, %arg7: memref<16x96xf32, #tpu.memory_space<vmem>>) attributes {dimension_semantics = [#tpu.dimension_semantics<parallel>, #tpu.dimension_semantics<parallel>, #tpu.dimension_semantics<arbitrary>], iteration_bounds = array<i64: 1, 1, 1>, scalar_prefetch = 0 : i64, scratch_operands = 1 : i64, tpu.core_type = #tpu.core_type<tc>, window_params = [{transform_indices = @transform_0, window_bounds = array<i64: 16, 32>}, {transform_indices = @transform_1, window_bounds = array<i64: 96, 32>}, {transform_indices = @transform_2, window_bounds = array<i64: 1, 96>}, {transform_indices = @transform_3, window_bounds = array<i64: 16, 96>}]} {
    %c0_i32 = arith.constant 0 : i32
    %0 = arith.cmpi eq, %arg2, %c0_i32 : i32
    %1 = arith.extui %0 : i1 to i32
    %c0_i32_0 = arith.constant 0 : i32
    %2 = arith.cmpi ne, %1, %c0_i32_0 : i32
    scf.if %2 {
      %c0_10 = arith.constant 0 : index
      %c0_11 = arith.constant 0 : index
      %12 = vector.load %arg5[%c0_10, %c0_11] : memref<1x96xf32, #tpu.memory_space<vmem>>, vector<1x96xf32>
      %13 = vector.shape_cast %12 : vector<1x96xf32> to vector<1x96xf32>
      %14 = vector.broadcast %13 : vector<1x96xf32> to vector<16x96xf32>
      %c0_12 = arith.constant 0 : index
      %c0_13 = arith.constant 0 : index
      %15 = vector.load %arg7[%c0_12, %c0_13] : memref<16x96xf32, #tpu.memory_space<vmem>>, vector<16x96xf32>
      tpu.vector_store %arg7[%c0_12, %c0_13], %14 {strides = array<i32>} : memref<16x96xf32, #tpu.memory_space<vmem>>, vector<16x96xf32>,
    } else {
    }
    %c0 = arith.constant 0 : index
    %c0_1 = arith.constant 0 : index
    %3 = vector.load %arg3[%c0, %c0_1] : memref<16x32xf32, #tpu.memory_space<vmem>>, vector<16x32xf32>
    %c0_2 = arith.constant 0 : index
    %c0_3 = arith.constant 0 : index
    %4 = vector.load %arg4[%c0_2, %c0_3] : memref<96x32xf32, #tpu.memory_space<vmem>>, vector<96x32xf32>
    %c0_4 = arith.constant 0 : index
    %c0_5 = arith.constant 0 : index
    %5 = vector.load %arg7[%c0_4, %c0_5] : memref<16x96xf32, #tpu.memory_space<vmem>>, vector<16x96xf32>
    %cst = arith.constant dense<0.000000e+00> : vector<16x96xf32>
    %6 = tpu.matmul %3, %4, %cst {dimension_numbers = #tpu.dot_dimension_numbers<[1], [1], [0], [0], [0, 0, 1, 0], [], []>} : vector<16x32xf32>, vector<96x32xf32>, vector<16x96xf32> -> vector<16x96xf32>
    %7 = arith.addf %5, %6 : vector<16x96xf32>
    %c0_6 = arith.constant 0 : index
    %c0_7 = arith.constant 0 : index
    %8 = vector.load %arg7[%c0_6, %c0_7] : memref<16x96xf32, #tpu.memory_space<vmem>>, vector<16x96xf32>
    tpu.vector_store %arg7[%c0_6, %c0_7], %7 {strides = array<i32>} : memref<16x96xf32, #tpu.memory_space<vmem>>, vector<16x96xf32>,
    %c0_i32_8 = arith.constant 0 : i32
    %9 = arith.cmpi eq, %arg2, %c0_i32_8 : i32
    %10 = arith.extui %9 : i1 to i32
    %c0_i32_9 = arith.constant 0 : i32
    %11 = arith.cmpi ne, %10, %c0_i32_9 : i32
    scf.if %11 {
      %c0_10 = arith.constant 0 : index
      %c0_11 = arith.constant 0 : index
      %12 = vector.load %arg7[%c0_10, %c0_11] : memref<16x96xf32, #tpu.memory_space<vmem>>, vector<16x96xf32>
      %c0_12 = arith.constant 0 : index
      %c0_13 = arith.constant 0 : index
      %13 = vector.load %arg6[%c0_12, %c0_13] : memref<16x96xf32, #tpu.memory_space<vmem>>, vector<16x96xf32>
      tpu.vector_store %arg6[%c0_12, %c0_13], %12 {strides = array<i32>} : memref<16x96xf32, #tpu.memory_space<vmem>>, vector<16x96xf32>,
    } else {
    }
    return
  }
  func.func @transform_0(%arg0: i32, %arg1: i32, %arg2: i32) -> (i32, i32) {
    %c0_i32 = arith.constant 0 : i32
    return %arg0, %arg2 : i32, i32
  }
  func.func @transform_1(%arg0: i32, %arg1: i32, %arg2: i32) -> (i32, i32) {
    %c0_i32 = arith.constant 0 : i32
    return %arg1, %arg2 : i32, i32
  }
  func.func @transform_2(%arg0: i32, %arg1: i32, %arg2: i32) -> (i32, i32) {
    %c0_i32 = arith.constant 0 : i32
    %c0_i32_0 = arith.constant 0 : i32
    return %c0_i32, %arg1 : i32, i32
  }
  func.func @transform_3(%arg0: i32, %arg1: i32, %arg2: i32) -> (i32, i32) {
    %c0_i32 = arith.constant 0 : i32
    return %arg0, %arg1 : i32, i32
  }
}

module attributes {stable_mosaic.version = 11 : i64} {
  func.func @kernel(%arg0: i32, %arg1: i32, %arg2: i32, %arg3: memref<16x32xf32, #tpu.memory_space<vmem>>, %arg4: memref<32x32xf32, #tpu.memory_space<vmem>>, %arg5: memref<1x32xf32, #tpu.memory_space<vmem>>, %arg6: memref<16x32xf32, #tpu.memory_space<vmem>>, %arg7: memref<16x32xf32, #tpu.memory_space<vmem>>) attributes {dimension_semantics = [#tpu.dimension_semantics<parallel>, #tpu.dimension_semantics<parallel>, #tpu.dimension_semantics<arbitrary>], iteration_bounds = array<i64: 1, 1, 1>, scalar_prefetch = 0 : i64, scratch_operands = 1 : i64, tpu.core_type = #tpu.core_type<tc>, window_params = [{transform_indices = @transform_0, window_bounds = array<i64: 16, 32>}, {transform_indices = @transform_1, window_bounds = array<i64: 32, 32>}, {transform_indices = @transform_2, window_bounds = array<i64: 1, 32>}, {transform_indices = @transform_3, window_bounds = array<i64: 16, 32>}]} {
    %c0_i32 = arith.constant 0 : i32
    %0 = arith.cmpi eq, %arg2, %c0_i32 : i32
    %1 = arith.extui %0 : i1 to i32
    %c0_i32_0 = arith.constant 0 : i32
    %2 = arith.cmpi ne, %1, %c0_i32_0 : i32
    scf.if %2 {
      %c0_10 = arith.constant 0 : index
      %c0_11 = arith.constant 0 : index
      %12 = vector.load %arg5[%c0_10, %c0_11] : memref<1x32xf32, #tpu.memory_space<vmem>>, vector<1x32xf32>
      %13 = vector.shape_cast %12 : vector<1x32xf32> to vector<1x32xf32>
      %14 = vector.broadcast %13 : vector<1x32xf32> to vector<16x32xf32>
      %c0_12 = arith.constant 0 : index
      %c0_13 = arith.constant 0 : index
      %15 = vector.load %arg7[%c0_12, %c0_13] : memref<16x32xf32, #tpu.memory_space<vmem>>, vector<16x32xf32>
      tpu.vector_store %arg7[%c0_12, %c0_13], %14 {strides = array<i32>} : memref<16x32xf32, #tpu.memory_space<vmem>>, vector<16x32xf32>,
    } else {
    }
    %c0 = arith.constant 0 : index
    %c0_1 = arith.constant 0 : index
    %3 = vector.load %arg3[%c0, %c0_1] : memref<16x32xf32, #tpu.memory_space<vmem>>, vector<16x32xf32>
    %c0_2 = arith.constant 0 : index
    %c0_3 = arith.constant 0 : index
    %4 = vector.load %arg4[%c0_2, %c0_3] : memref<32x32xf32, #tpu.memory_space<vmem>>, vector<32x32xf32>
    %c0_4 = arith.constant 0 : index
    %c0_5 = arith.constant 0 : index
    %5 = vector.load %arg7[%c0_4, %c0_5] : memref<16x32xf32, #tpu.memory_space<vmem>>, vector<16x32xf32>
    %cst = arith.constant dense<0.000000e+00> : vector<16x32xf32>
    %6 = tpu.matmul %3, %4, %cst {dimension_numbers = #tpu.dot_dimension_numbers<[1], [1], [0], [0], [0, 0, 1, 0], [], []>} : vector<16x32xf32>, vector<32x32xf32>, vector<16x32xf32> -> vector<16x32xf32>
    %7 = arith.addf %5, %6 : vector<16x32xf32>
    %c0_6 = arith.constant 0 : index
    %c0_7 = arith.constant 0 : index
    %8 = vector.load %arg7[%c0_6, %c0_7] : memref<16x32xf32, #tpu.memory_space<vmem>>, vector<16x32xf32>
    tpu.vector_store %arg7[%c0_6, %c0_7], %7 {strides = array<i32>} : memref<16x32xf32, #tpu.memory_space<vmem>>, vector<16x32xf32>,
    %c0_i32_8 = arith.constant 0 : i32
    %9 = arith.cmpi eq, %arg2, %c0_i32_8 : i32
    %10 = arith.extui %9 : i1 to i32
    %c0_i32_9 = arith.constant 0 : i32
    %11 = arith.cmpi ne, %10, %c0_i32_9 : i32
    scf.if %11 {
      %c0_10 = arith.constant 0 : index
      %c0_11 = arith.constant 0 : index
      %12 = vector.load %arg7[%c0_10, %c0_11] : memref<16x32xf32, #tpu.memory_space<vmem>>, vector<16x32xf32>
      %c0_12 = arith.constant 0 : index
      %c0_13 = arith.constant 0 : index
      %13 = vector.load %arg6[%c0_12, %c0_13] : memref<16x32xf32, #tpu.memory_space<vmem>>, vector<16x32xf32>
      tpu.vector_store %arg6[%c0_12, %c0_13], %12 {strides = array<i32>} : memref<16x32xf32, #tpu.memory_space<vmem>>, vector<16x32xf32>,
    } else {
    }
    return
  }
  func.func @transform_0(%arg0: i32, %arg1: i32, %arg2: i32) -> (i32, i32) {
    %c0_i32 = arith.constant 0 : i32
    return %arg0, %arg2 : i32, i32
  }
  func.func @transform_1(%arg0: i32, %arg1: i32, %arg2: i32) -> (i32, i32) {
    %c0_i32 = arith.constant 0 : i32
    return %arg1, %arg2 : i32, i32
  }
  func.func @transform_2(%arg0: i32, %arg1: i32, %arg2: i32) -> (i32, i32) {
    %c0_i32 = arith.constant 0 : i32
    %c0_i32_0 = arith.constant 0 : i32
    return %c0_i32, %arg1 : i32, i32
  }
  func.func @transform_3(%arg0: i32, %arg1: i32, %arg2: i32) -> (i32, i32) {
    %c0_i32 = arith.constant 0 : i32
    return %arg0, %arg1 : i32, i32
  }
}

module attributes {stable_mosaic.version = 11 : i64} {
  func.func @kernel(%arg0: i32, %arg1: i32, %arg2: memref<4x8x8xf32, #tpu.memory_space<vmem>>, %arg3: memref<4x8x8xf32, #tpu.memory_space<vmem>>, %arg4: memref<4x8x8xf32, #tpu.memory_space<vmem>>, %arg5: memref<4x8x8xf32, #tpu.memory_space<vmem>>, %arg6: memref<4x1x8xf32, #tpu.memory_space<vmem>>) attributes {dimension_semantics = [#tpu.dimension_semantics<parallel>, #tpu.dimension_semantics<arbitrary>], iteration_bounds = array<i64: 2, 1>, scalar_prefetch = 0 : i64, scratch_operands = 0 : i64, tpu.core_type = #tpu.core_type<tc>, window_params = [{transform_indices = @transform_0, window_bounds = array<i64: 4, 8, 8>}, {transform_indices = @transform_1, window_bounds = array<i64: 4, 8, 8>}, {transform_indices = @transform_2, window_bounds = array<i64: 4, 8, 8>}, {transform_indices = @transform_3, window_bounds = array<i64: 4, 8, 8>}, {transform_indices = @transform_4, window_bounds = array<i64: 4, 1, 8>}]} {
    %c0 = arith.constant 0 : index
    %c0_0 = arith.constant 0 : index
    %c0_1 = arith.constant 0 : index
    %0 = vector.load %arg2[%c0, %c0_0, %c0_1] : memref<4x8x8xf32, #tpu.memory_space<vmem>>, vector<4x8x8xf32>
    %cst = arith.constant 0.353553385 : f32
    %1 = vector.broadcast %cst : f32 to vector<4x8x8xf32>
    %2 = arith.mulf %0, %1 : vector<4x8x8xf32>
    %c0_2 = arith.constant 0 : index
    %c0_3 = arith.constant 0 : index
    %c0_4 = arith.constant 0 : index
    %3 = vector.load %arg3[%c0_2, %c0_3, %c0_4] : memref<4x8x8xf32, #tpu.memory_space<vmem>>, vector<4x8x8xf32>
    %c0_5 = arith.constant 0 : index
    %c0_6 = arith.constant 0 : index
    %c0_7 = arith.constant 0 : index
    %4 = vector.load %arg4[%c0_5, %c0_6, %c0_7] : memref<4x8x8xf32, #tpu.memory_space<vmem>>, vector<4x8x8xf32>
    %cst_8 = arith.constant dense<0.000000e+00> : vector<4x8x8xf32>
    %5 = tpu.matmul %2, %3, %cst_8 {dimension_numbers = #tpu.dot_dimension_numbers<[2], [2], [1], [1], [0, 0, 0, 1, 1, 1], [0], [0]>} : vector<4x8x8xf32>, vector<4x8x8xf32>, vector<4x8x8xf32> -> vector<4x8x8xf32>
    %cst_9 = arith.constant dense<0xFF800000> : vector<4x8xf32>
    %6 = vector.multi_reduction <maximumf>, %5, %cst_9 [2] : vector<4x8x8xf32> to vector<4x8xf32>
    %7 = vector.shape_cast %6 : vector<4x8xf32> to vector<4x8x1xf32>
    %8 = vector.broadcast %7 : vector<4x8x1xf32> to vector<4x8x8xf32>
    %9 = arith.subf %5, %8 : vector<4x8x8xf32>
    %10 = math.exp %9 : vector<4x8x8xf32>
    %cst_10 = arith.constant dense<0.000000e+00> : vector<4x8xf32>
    %11 = vector.multi_reduction <add>, %10, %cst_10 [2] : vector<4x8x8xf32> to vector<4x8xf32>
    %12 = vector.shape_cast %11 : vector<4x8xf32> to vector<4x8x1xf32>
    %cst_11 = arith.constant 1.000000e+00 : f32
    %13 = vector.broadcast %cst_11 : f32 to vector<4x8x1xf32>
    %14 = arith.divf %13, %12 : vector<4x8x1xf32>
    %cst_12 = arith.constant dense<0.000000e+00> : vector<4x8x8xf32>
    %15 = tpu.matmul %10, %4, %cst_12 {dimension_numbers = #tpu.dot_dimension_numbers<[2], [1], [1], [2], [0, 0, 0, 1, 1, 2], [0], [0]>} : vector<4x8x8xf32>, vector<4x8x8xf32>, vector<4x8x8xf32> -> vector<4x8x8xf32>
    %16 = vector.broadcast %14 : vector<4x8x1xf32> to vector<4x8x8xf32>
    %17 = arith.mulf %15, %16 : vector<4x8x8xf32>
    %c0_13 = arith.constant 0 : index
    %c0_14 = arith.constant 0 : index
    %c0_15 = arith.constant 0 : index
    %18 = vector.load %arg5[%c0_13, %c0_14, %c0_15] : memref<4x8x8xf32, #tpu.memory_space<vmem>>, vector<4x8x8xf32>
    tpu.vector_store %arg5[%c0_13, %c0_14, %c0_15], %17 {strides = array<i32>} : memref<4x8x8xf32, #tpu.memory_space<vmem>>, vector<4x8x8xf32>,
    %cst_16 = arith.constant dense<0.000000e+00> : vector<4x1x8xf32>
    %19 = tpu.matmul %14, %10, %cst_16 {dimension_numbers = #tpu.dot_dimension_numbers<[1], [1], [2], [2], [0, 0, 0, 2, 1, 2], [0], [0]>} : vector<4x8x1xf32>, vector<4x8x8xf32>, vector<4x1x8xf32> -> vector<4x1x8xf32>
    %c0_i32 = arith.constant 0 : i32
    %20 = arith.cmpi eq, %arg1, %c0_i32 : i32
    %21 = arith.extui %20 : i1 to i32
    %c0_i32_17 = arith.constant 0 : i32
    %22 = arith.cmpi ne, %21, %c0_i32_17 : i32
    scf.if %22 {
      %cst_25 = arith.constant 0.000000e+00 : f32
      %28 = vector.broadcast %cst_25 : f32 to vector<4x1x8xf32>
      %c0_26 = arith.constant 0 : index
      %c0_27 = arith.constant 0 : index
      %c0_28 = arith.constant 0 : index
      %29 = vector.load %arg6[%c0_26, %c0_27, %c0_28] : memref<4x1x8xf32, #tpu.memory_space<vmem>>, vector<4x1x8xf32>
      tpu.vector_store %arg6[%c0_26, %c0_27, %c0_28], %28 {strides = array<i32>} : memref<4x1x8xf32, #tpu.memory_space<vmem>>, vector<4x1x8xf32>,
    } else {
    }
    %c0_18 = arith.constant 0 : index
    %c0_19 = arith.constant 0 : index
    %c0_20 = arith.constant 0 : index
    %23 = vector.load %arg6[%c0_18, %c0_19, %c0_20] : memref<4x1x8xf32, #tpu.memory_space<vmem>>, vector<4x1x8xf32>
    %cst_21 = arith.constant 2.500000e-01 : f32
    %24 = vector.broadcast %cst_21 : f32 to vector<4x1x8xf32>
    %25 = arith.mulf %19, %24 : vector<4x1x8xf32>
    %26 = arith.addf %23, %25 : vector<4x1x8xf32>
    %c0_22 = arith.constant 0 : index
    %c0_23 = arith.constant 0 : index
    %c0_24 = arith.constant 0 : index
    %27 = vector.load %arg6[%c0_22, %c0_23, %c0_24] : memref<4x1x8xf32, #tpu.memory_space<vmem>>, vector<4x1x8xf32>
    tpu.vector_store %arg6[%c0_22, %c0_23, %c0_24], %26 {strides = array<i32>} : memref<4x1x8xf32, #tpu.memory_space<vmem>>, vector<4x1x8xf32>,
    return
  }
  func.func @transform_0(%arg0: i32, %arg1: i32) -> (i32, i32, i32) {
    %c0_i32 = arith.constant 0 : i32
    %c0_i32_0 = arith.constant 0 : i32
    return %arg0, %arg1, %c0_i32 : i32, i32, i32
  }
  func.func @transform_1(%arg0: i32, %arg1: i32) -> (i32, i32, i32) {
    %c0_i32 = arith.constant 0 : i32
    %c0_i32_0 = arith.constant 0 : i32
    %c0_i32_1 = arith.constant 0 : i32
    return %arg0, %c0_i32, %c0_i32_0 : i32, i32, i32
  }
  func.func @transform_2(%arg0: i32, %arg1: i32) -> (i32, i32, i32) {
    %c0_i32 = arith.constant 0 : i32
    %c0_i32_0 = arith.constant 0 : i32
    %c0_i32_1 = arith.constant 0 : i32
    return %arg0, %c0_i32, %c0_i32_0 : i32, i32, i32
  }
  func.func @transform_3(%arg0: i32, %arg1: i32) -> (i32, i32, i32) {
    %c0_i32 = arith.constant 0 : i32
    %c0_i32_0 = arith.constant 0 : i32
    return %arg0, %arg1, %c0_i32 : i32, i32, i32
  }
  func.func @transform_4(%arg0: i32, %arg1: i32) -> (i32, i32, i32) {
    %c0_i32 = arith.constant 0 : i32
    %c0_i32_0 = arith.constant 0 : i32
    %c0_i32_1 = arith.constant 0 : i32
    return %arg0, %c0_i32, %c0_i32_0 : i32, i32, i32
  }
}

</mosaic_0001>

<llo_original>
// kernel: _lambda_.3
$region0: #{_lambda_.3}
  #allocation0 [shape = 'u32[]', space=smem, size = 0x4, offset = 0x4, fixed_abs, tag = 'smem constant byte address 0x4 - core index']
  #allocation1 [shape = 'u32[144,128]{1,0:T(1,128)}', space=vmem, size = 0x12000, scoped, tag = 'internal scratch']
  #allocation2 [shape = 'f32[16,96]{1,0:T(8,128)}', space=vmem, size = 0x2000, scoped, tag = 'scratch operand']
  %s0 = inlined_call_operand.vmem [shape: f32[16,32], index: 0, kind: input, shape index: {}]
  %s1 = inlined_call_operand.vmem [shape: f32[96,32], index: 1, kind: input, shape index: {}]
  %s2 = inlined_call_operand.vmem [shape: f32[1,96], index: 2, kind: input, shape index: {}]
  %s3 = inlined_call_operand.vmem [shape: f32[16,96], index: 3, kind: output, shape index: {}]
  %s4 = sld [smem:[#allocation0]]
  $region30: #{_lambda_.3} parent=0
    _
  %s6 = ssub.s32 1, %s4
  %s7 = scalar_select 0, %s6, %s4
  // Predicated region
  $region2: #{_lambda_.3} parent=0 // pred_check
    _
  $region3: #{_lambda_.3} parent=0 // pred_check_branch
    %9 = sbr.rel (0) target = $region5
  $region4: #{_lambda_.3} parent=0 // pred_region
    _
  $region5: #{_lambda_.3} parent=0 // pred_fallthru
    _
  // Predicated region
  $region6: #{_lambda_.3} parent=0 // pred_check
    _
  $region7: #{_lambda_.3} parent=0 // pred_check_branch
    %11 = sbr.rel (0) target = $region9
  $region8: #{_lambda_.3} parent=0 // pred_region
    _
  $region9: #{_lambda_.3} parent=0 // pred_fallthru
    _
  // Predicated region
  $region10: #{_lambda_.3} parent=0 // pred_check
    _
  $region11: #{_lambda_.3} parent=0 // pred_check_branch
    %13 = sbr.rel (0) target = $region13
  $region12: #{_lambda_.3} parent=0 // pred_region
    _
  $region13: #{_lambda_.3} parent=0 // pred_fallthru
    _
  %p14 = scmp.eq.s32.totalorder 0, 0
  // Predicated region
  $region14: #{_lambda_.3} parent=0 // pred_check
    %p15 = pneg %p14
  $region15: #{_lambda_.3} parent=0 // pred_check_branch
    %17 = sbr.rel (%p15) target = $region17
  $region16: #{_lambda_.3} parent=0 // pred_region
    %v18 = vld [vmem:[%s2] sm:$0x1]
    %v20 = vlaneseq
    %v21 = vshrl.u32 %v20, 7
    %v22 = vsub.s32 0, %v21
    %v23 = vrot.slane %v18, %v22
    %vm25 = vcmask 785408
    %26 = vst.msk [vmem:[#allocation2] sm:$0xff] %vm25, %v23
    %27 = vst.msk [vmem:[#allocation2 + $0x8] sm:$0xff] %vm25, %v23
  $region17: #{_lambda_.3} parent=0 // pred_fallthru
    _
  %v28 = vld [vmem:[%s0] sm:$0xff]
  %v29 = vld [vmem:[%s0 + $0x8] sm:$0xff]
  %v30 = vld [vmem:[%s1] sm:$0xff]
  %v31 = vld [vmem:[%s1 + $0x8] sm:$0xff]
  %v32 = vld [vmem:[%s1 + $0x10] sm:$0xff]
  %v33 = vld [vmem:[%s1 + $0x18] sm:$0xff]
  %v34 = vld [vmem:[%s1 + $0x20] sm:$0xff]
  %v35 = vld [vmem:[%s1 + $0x28] sm:$0xff]
  %v36 = vld [vmem:[%s1 + $0x30] sm:$0xff]
  %v37 = vld [vmem:[%s1 + $0x38] sm:$0xff]
  %v38 = vld [vmem:[%s1 + $0x40] sm:$0xff]
  %v39 = vld [vmem:[%s1 + $0x48] sm:$0xff]
  %v40 = vld [vmem:[%s1 + $0x50] sm:$0xff]
  %v41 = vld [vmem:[%s1 + $0x58] sm:$0xff]
  %v42 = vld [vmem:[#allocation2] sm:$0xff]
  %v43 = vld [vmem:[#allocation2 + $0x8] sm:$0xff]
  %vm44 = vcmask 261120
  %v46 = vsel %vm44, %v28, 0
  %v49 = vsel %vm44, %v29, 0
  %v52 = vsel %vm44, %v30, 0
  %v55 = vsel %vm44, %v31, 0
  %v58 = vsel %vm44, %v32, 0
  %v61 = vsel %vm44, %v33, 0
  %v64 = vsel %vm44, %v34, 0
  %v67 = vsel %vm44, %v35, 0
  %v70 = vsel %vm44, %v36, 0
  %v73 = vsel %vm44, %v37, 0
  %v76 = vsel %vm44, %v38, 0
  %v79 = vsel %vm44, %v39, 0
  %v82 = vsel %vm44, %v40, 0
  %v85 = vsel %vm44, %v41, 0
  %87 = vmatprep.subr.mxu0 0.0
  %88 = vmatpush1.xpose.msra.mxu0 0.0
  %89 = vmatprep.subr.mxu0 0.0
  %90 = vmatpush1.xpose.msra.mxu0 0.0
  %91 = vmatprep.subr.mxu0 0.0
  %92 = vmatpush1.xpose.msra.mxu0 0.0
  %93 = vmatprep.subr.mxu0 0.0
  %94 = vmatpush1.xpose.msra.mxu0 0.0
  %95 = vmatprep.subr.mxu0 0.0
  %96 = vmatpush1.xpose.msra.mxu0 %v85
  %97 = vmatprep.subr.mxu0 0.0
  %98 = vmatpush1.xpose.msra.mxu0 %v82
  %99 = vmatprep.subr.mxu0 0.0
  %100 = vmatpush1.xpose.msra.mxu0 %v79
  %101 = vmatprep.subr.mxu0 0.0
  %102 = vmatpush1.xpose.msra.mxu0 %v76
  %103 = vmatprep.subr.mxu0 0.0
  %104 = vmatpush1.xpose.msra.mxu0 %v73
  %105 = vmatprep.subr.mxu0 0.0
  %106 = vmatpush1.xpose.msra.mxu0 %v70
  %107 = vmatprep.subr.mxu0 0.0
  %108 = vmatpush1.xpose.msra.mxu0 %v67
  %109 = vmatprep.subr.mxu0 0.0
  %110 = vmatpush1.xpose.msra.mxu0 %v64
  %111 = vmatprep.subr.mxu0 0.0
  %112 = vmatpush1.xpose.msra.mxu0 %v61
  %113 = vmatprep.subr.mxu0 0.0
  %114 = vmatpush1.xpose.msra.mxu0 %v58
  %115 = vmatprep.subr.mxu0 0.0
  %116 = vmatpush1.xpose.msra.mxu0 %v55
  %117 = vmatprep.subr.mxu0 0.0
  %118 = vmatpush1.xpose.msra.mxu0 %v52
  %119 = vmatprep.subr.mxu0 0.0
  %120 = vmatpush2.xpose.msra.mxu0 0.0
  %121 = vmatprep.subr.mxu0 0.0
  %122 = vmatpush2.xpose.msra.mxu0 0.0
  %123 = vmatprep.subr.mxu0 0.0
  %124 = vmatpush2.xpose.msra.mxu0 0.0
  %125 = vmatprep.subr.mxu0 0.0
  %126 = vmatpush2.xpose.msra.mxu0 0.0
  %127 = vmatprep.subr.mxu0 0.0
  %128 = vmatpush2.xpose.msra.mxu0 0.0
  %129 = vmatprep.subr.mxu0 0.0
  %130 = vmatpush2.xpose.msra.mxu0 0.0
  %131 = vmatprep.subr.mxu0 0.0
  %132 = vmatpush2.xpose.msra.mxu0 0.0
  %133 = vmatprep.subr.mxu0 0.0
  %134 = vmatpush2.xpose.msra.mxu0 0.0
  %135 = vmatprep.subr.mxu0 0.0
  %136 = vmatpush2.xpose.msra.mxu0 0.0
  %137 = vmatprep.subr.mxu0 0.0
  %138 = vmatpush2.xpose.msra.mxu0 0.0
  %139 = vmatprep.subr.mxu0 0.0
  %140 = vmatpush2.xpose.msra.mxu0 0.0
  %141 = vmatprep.subr.mxu0 0.0
  %142 = vmatpush2.xpose.msra.mxu0 0.0
  %143 = vmatprep.subr.mxu0 0.0
  %144 = vmatpush2.xpose.msra.mxu0 0.0
  %145 = vmatprep.subr.mxu0 0.0
  %146 = vmatpush2.xpose.msra.mxu0 0.0
  %147 = vmatprep.subr.mxu0 0.0
  %148 = vmatpush2.xpose.msra.mxu0 0.0
  %149 = vmatprep.subr.mxu0 0.0
  %150 = vmatpush2.xpose.msra.mxu0 0.0
  %151 = vmatprep.mubr.f32.mxu0 0.0
  %152 = vmatmul.mubr.f32.gmra.mxu0 %v46
  %v153 = vpop.f32.mrf.mxu0
  %v154 = vadd.f32 0.0, %v153
  %v155 = vpop.f32.mrf.mxu0
  %156 = vmatprep.mubr.f32.mxu0 0.0
  %157 = vmatmul.mubr.f32.gmra.mxu0 %v49
  %v158 = vpop.f32.mrf.mxu0
  %v159 = vadd.f32 0.0, %v158
  %v160 = vpop.f32.mrf.mxu0
  %161 = vdwg.mxu0
  %v162 = vadd.f32 %v42, %v154
  %v163 = vadd.f32 %v43, %v159
  %vm164 = vcmask 785408
  %165 = vst.msk [vmem:[#allocation2] sm:$0xff] %vm164, %v162
  %166 = vst.msk [vmem:[#allocation2 + $0x8] sm:$0xff] %vm164, %v163
  // Predicated region
  $region18: #{_lambda_.3} parent=0 // pred_check
    %p167 = pneg %p14
  $region19: #{_lambda_.3} parent=0 // pred_check_branch
    %169 = sbr.rel (%p167) target = $region21
  $region20: #{_lambda_.3} parent=0 // pred_region
    %v170 = vld [vmem:[#allocation2] sm:$0xff]
    %v171 = vld [vmem:[#allocation2 + $0x8] sm:$0xff]
    %172 = vst.msk [vmem:[%s3] sm:$0xff] %vm164, %v170
    %173 = vst.msk [vmem:[%s3 + $0x8] sm:$0xff] %vm164, %v171
  $region21: #{_lambda_.3} parent=0 // pred_fallthru
    _
  // Predicated region
  $region22: #{_lambda_.3} parent=0 // pred_check
    _
  $region23: #{_lambda_.3} parent=0 // pred_check_branch
    %175 = sbr.rel (0) target = $region25
  $region24: #{_lambda_.3} parent=0 // pred_region
    _
  $region25: #{_lambda_.3} parent=0 // pred_fallthru
    _
  // Predicated region
  $region26: #{_lambda_.3} parent=0 // pred_check
    _
  $region27: #{_lambda_.3} parent=0 // pred_check_branch
    %177 = sbr.rel (0) target = $region29
  $region28: #{_lambda_.3} parent=0 // pred_region
    _
  $region29: #{_lambda_.3} parent=0 // pred_fallthru
    _

// kernel: _lambda_.5
$region0: #{_lambda_.5}
  #allocation0 [shape = 'u32[]', space=smem, size = 0x4, offset = 0x4, fixed_abs, tag = 'smem constant byte address 0x4 - core index']
  #allocation1 [shape = 'u32[144,128]{1,0:T(1,128)}', space=vmem, size = 0x12000, scoped, tag = 'internal scratch']
  #allocation2 [shape = 'f32[16,32]{1,0:T(8,128)}', space=vmem, size = 0x2000, scoped, tag = 'scratch operand']
  %s0 = inlined_call_operand.vmem [shape: f32[16,32], index: 0, kind: input, shape index: {}]
  %s1 = inlined_call_operand.vmem [shape: f32[32,32], index: 1, kind: input, shape index: {}]
  %s2 = inlined_call_operand.vmem [shape: f32[1,32], index: 2, kind: input, shape index: {}]
  %s3 = inlined_call_operand.hbm [shape: f32[16,32], index: 3, kind: output, shape index: {}]
  %s4 = sld [smem:[#allocation0]]
  $region30: #{_lambda_.5} parent=0
    _
  %s6 = ssub.s32 1, %s4
  %s7 = scalar_select 0, %s6, %s4
  $region1: #{_lambda_.5} parent=0
    #allocation3 [shape = 'u8[8192]{0}', space=vmem, size = 0x2000, scoped, tag = 'output window, operand 0, single buffered']
    #allocation4 [shape = 's32[1]{0}', space=sflag, size = 0x4, scoped, tag = 'scoped memory for _lambda_.5']
    %8 = vsyncpa [#allocation4], 0
    // Predicated region
    $region2: #{_lambda_.5} parent=1 // pred_check
      _
    $region3: #{_lambda_.5} parent=1 // pred_check_branch
      %10 = sbr.rel (0) target = $region5
    $region4: #{_lambda_.5} parent=1 // pred_region
      _
    $region5: #{_lambda_.5} parent=1 // pred_fallthru
      _
    // Predicated region
    $region6: #{_lambda_.5} parent=1 // pred_check
      _
    $region7: #{_lambda_.5} parent=1 // pred_check_branch
      %12 = sbr.rel (0) target = $region9
    $region8: #{_lambda_.5} parent=1 // pred_region
      _
    $region9: #{_lambda_.5} parent=1 // pred_fallthru
      _
    // Predicated region
    $region10: #{_lambda_.5} parent=1 // pred_check
      _
    $region11: #{_lambda_.5} parent=1 // pred_check_branch
      %14 = sbr.rel (0) target = $region13
    $region12: #{_lambda_.5} parent=1 // pred_region
      _
    $region13: #{_lambda_.5} parent=1 // pred_fallthru
      _
    %p15 = scmp.eq.s32.totalorder 0, 0
    // Predicated region
    $region14: #{_lambda_.5} parent=1 // pred_check
      %p16 = pneg %p15
    $region15: #{_lambda_.5} parent=1 // pred_check_branch
      %18 = sbr.rel (%p16) target = $region17
    $region16: #{_lambda_.5} parent=1 // pred_region
      %v19 = vld [vmem:[%s2] sm:$0x1]
      %v21 = vlaneseq
      %v22 = vshrl.u32 %v21, 7
      %v23 = vsub.s32 0, %v22
      %v24 = vrot.slane %v19, %v23
      %vm26 = vcmask 261120
      %27 = vst.msk [vmem:[#allocation2] sm:$0xff] %vm26, %v24
      %28 = vst.msk [vmem:[#allocation2 + $0x8] sm:$0xff] %vm26, %v24
    $region17: #{_lambda_.5} parent=1 // pred_fallthru
      _
    %v29 = vld [vmem:[%s0] sm:$0xff]
    %v30 = vld [vmem:[%s0 + $0x8] sm:$0xff]
    %v31 = vld [vmem:[%s1] sm:$0xff]
    %v32 = vld [vmem:[%s1 + $0x8] sm:$0xff]
    %v33 = vld [vmem:[%s1 + $0x10] sm:$0xff]
    %v34 = vld [vmem:[%s1 + $0x18] sm:$0xff]
    %v35 = vld [vmem:[#allocation2] sm:$0xff]
    %v36 = vld [vmem:[#allocation2 + $0x8] sm:$0xff]
    %vm37 = vcmask 261120
    %v39 = vsel %vm37, %v29, 0
    %v42 = vsel %vm37, %v30, 0
    %v45 = vsel %vm37, %v31, 0
    %v48 = vsel %vm37, %v32, 0
    %v51 = vsel %vm37, %v33, 0
    %v54 = vsel %vm37, %v34, 0
    %56 = vmatprep.subr.mxu0 0.0
    %57 = vmatpush1.xpose.msra.mxu0 0.0
    %58 = vmatprep.subr.mxu0 0.0
    %59 = vmatpush1.xpose.msra.mxu0 0.0
    %60 = vmatprep.subr.mxu0 0.0
    %61 = vmatpush1.xpose.msra.mxu0 0.0
    %62 = vmatprep.subr.mxu0 0.0
    %63 = vmatpush1.xpose.msra.mxu0 0.0
    %64 = vmatprep.subr.mxu0 0.0
    %65 = vmatpush1.xpose.msra.mxu0 0.0
    %66 = vmatprep.subr.mxu0 0.0
    %67 = vmatpush1.xpose.msra.mxu0 0.0
    %68 = vmatprep.subr.mxu0 0.0
    %69 = vmatpush1.xpose.msra.mxu0 0.0
    %70 = vmatprep.subr.mxu0 0.0
    %71 = vmatpush1.xpose.msra.mxu0 0.0
    %72 = vmatprep.subr.mxu0 0.0
    %73 = vmatpush1.xpose.msra.mxu0 0.0
    %74 = vmatprep.subr.mxu0 0.0
    %75 = vmatpush1.xpose.msra.mxu0 0.0
    %76 = vmatprep.subr.mxu0 0.0
    %77 = vmatpush1.xpose.msra.mxu0 0.0
    %78 = vmatprep.subr.mxu0 0.0
    %79 = vmatpush1.xpose.msra.mxu0 0.0
    %80 = vmatprep.subr.mxu0 0.0
    %81 = vmatpush1.xpose.msra.mxu0 %v54
    %82 = vmatprep.subr.mxu0 0.0
    %83 = vmatpush1.xpose.msra.mxu0 %v51
    %84 = vmatprep.subr.mxu0 0.0
    %85 = vmatpush1.xpose.msra.mxu0 %v48
    %86 = vmatprep.subr.mxu0 0.0
    %87 = vmatpush1.xpose.msra.mxu0 %v45
    %88 = vmatprep.subr.mxu0 0.0
    %89 = vmatpush2.xpose.msra.mxu0 0.0
    %90 = vmatprep.subr.mxu0 0.0
    %91 = vmatpush2.xpose.msra.mxu0 0.0
    %92 = vmatprep.subr.mxu0 0.0
    %93 = vmatpush2.xpose.msra.mxu0 0.0
    %94 = vmatprep.subr.mxu0 0.0
    %95 = vmatpush2.xpose.msra.mxu0 0.0
    %96 = vmatprep.subr.mxu0 0.0
    %97 = vmatpush2.xpose.msra.mxu0 0.0
    %98 = vmatprep.subr.mxu0 0.0
    %99 = vmatpush2.xpose.msra.mxu0 0.0
    %100 = vmatprep.subr.mxu0 0.0
    %101 = vmatpush2.xpose.msra.mxu0 0.0
    %102 = vmatprep.subr.mxu0 0.0
    %103 = vmatpush2.xpose.msra.mxu0 0.0
    %104 = vmatprep.subr.mxu0 0.0
    %105 = vmatpush2.xpose.msra.mxu0 0.0
    %106 = vmatprep.subr.mxu0 0.0
    %107 = vmatpush2.xpose.msra.mxu0 0.0
    %108 = vmatprep.subr.mxu0 0.0
    %109 = vmatpush2.xpose.msra.mxu0 0.0
    %110 = vmatprep.subr.mxu0 0.0
    %111 = vmatpush2.xpose.msra.mxu0 0.0
    %112 = vmatprep.subr.mxu0 0.0
    %113 = vmatpush2.xpose.msra.mxu0 0.0
    %114 = vmatprep.subr.mxu0 0.0
    %115 = vmatpush2.xpose.msra.mxu0 0.0
    %116 = vmatprep.subr.mxu0 0.0
    %117 = vmatpush2.xpose.msra.mxu0 0.0
    %118 = vmatprep.subr.mxu0 0.0
    %119 = vmatpush2.xpose.msra.mxu0 0.0
    %120 = vmatprep.mubr.f32.mxu0 0.0
    %121 = vmatmul.mubr.f32.gmra.mxu0 %v39
    %v122 = vpop.f32.mrf.mxu0
    %v123 = vadd.f32 0.0, %v122
    %v124 = vpop.f32.mrf.mxu0
    %125 = vmatprep.mubr.f32.mxu0 0.0
    %126 = vmatmul.mubr.f32.gmra.mxu0 %v42
    %v127 = vpop.f32.mrf.mxu0
    %v128 = vadd.f32 0.0, %v127
    %v129 = vpop.f32.mrf.mxu0
    %130 = vdwg.mxu0
    %v131 = vadd.f32 %v35, %v123
    %v132 = vadd.f32 %v36, %v128
    %133 = vst.msk [vmem:[#allocation2] sm:$0xff] %vm37, %v131
    %134 = vst.msk [vmem:[#allocation2 + $0x8] sm:$0xff] %vm37, %v132
    // Predicated region
    $region18: #{_lambda_.5} parent=1 // pred_check
      %p135 = pneg %p15
    $region19: #{_lambda_.5} parent=1 // pred_check_branch
      %137 = sbr.rel (%p135) target = $region21
    $region20: #{_lambda_.5} parent=1 // pred_region
      %v138 = vld [vmem:[#allocation2] sm:$0xff]
      %v139 = vld [vmem:[#allocation2 + $0x8] sm:$0xff]
      %140 = vst.msk [vmem:[#allocation3] sm:$0xff] %vm37, %v138
      %141 = vst.msk [vmem:[#allocation3 + $0x8] sm:$0xff] %vm37, %v139
    $region21: #{_lambda_.5} parent=1 // pred_fallthru
      _
    // Predicated region
    $region22: #{_lambda_.5} parent=1 // pred_check
      _
    $region23: #{_lambda_.5} parent=1 // pred_check_branch
      %143 = sbr.rel (0) target = $region25
    $region24: #{_lambda_.5} parent=1 // pred_region
      %s145 = ssub.s32 256, 256
      %146 = vsyncadd [#allocation4], %s145
      %s147 = sshll.u32 [#allocation3], 4
      %s148 = int_to_ptr.vmem [resolvable:$true] %s147
      %153 = dma.vmem_to_hbm [thread:$0]  %s148, 256, %s3, [#allocation4], 128, 128, 8
    $region25: #{_lambda_.5} parent=1 // pred_fallthru
      _
    // Predicated region
    $region26: #{_lambda_.5} parent=1 // pred_check
      _
    $region27: #{_lambda_.5} parent=1 // pred_check_branch
      %155 = sbr.rel (0) target = $region29
    $region28: #{_lambda_.5} parent=1 // pred_region
      %156 = dma.done [#allocation4], 256
    $region29: #{_lambda_.5} parent=1 // pred_fallthru
      _
    %157 = vsyncpa [#allocation4], 1

// kernel: _lambda_.4
$region0: #{_lambda_.4}
  #allocation0 [shape = 'u32[]', space=smem, size = 0x4, offset = 0x4, fixed_abs, tag = 'smem constant byte address 0x4 - core index']
  #allocation1 [shape = 'u32[144,128]{1,0:T(1,128)}', space=vmem, size = 0x12000, scoped, tag = 'internal scratch']
  %s0 = inlined_call_operand.vmem [shape: f32[8,8,8], index: 0, kind: input, shape index: {}]
  %s1 = inlined_call_operand.vmem [shape: f32[8,8,8], index: 1, kind: input, shape index: {}]
  %s2 = inlined_call_operand.vmem [shape: f32[8,8,8], index: 2, kind: input, shape index: {}]
  %s3 = inlined_call_operand.vmem [shape: f32[8,8,8], index: 3, kind: output, shape index: {0}]
  %s4 = inlined_call_operand.hbm [shape: f32[8,1,8], index: 4, kind: output, shape index: {1}]
  %5 = xla_tuple %s3, %s4
  %s6 = sld [smem:[#allocation0]]
  $region57: #{_lambda_.4} parent=0
    _
  %s8 = ssub.s32 1, %s6
  %s9 = scalar_select 0, %s8, %s6
  $region1: #{_lambda_.4} parent=0
    #allocation2 [shape = 'u8[4096]{0}', space=vmem, size = 0x1000, scoped, tag = 'output window, operand 1']
    #allocation3 [shape = 's32[2]{0}', space=sflag, size = 0x8, scoped, tag = 'scoped memory for _lambda_.4']
    %10 = vsyncpa [#allocation3], 0
    %s11 = scalar_lea.sflag [#allocation3], 1
    %12 = vsyncpa %s11, 0
    loop: start=0, step=1, limit=4
    $region2: #{_lambda_.4} parent=1 // loop_pre_header
      _
    $region3: #{_lambda_.4} parent=1 // loop_header
      %s14 = sphi 0, %s18
      %p15 = scmp.ge.s32.totalorder %s14, 4
      %s21 = sphi 0, %s33
      %s22 = sphi 0, %s29
      %s23 = sphi 0, %s21
      %s24 = sphi 0, %s22
      %s25 = sphi 0, %s23
      %s26 = sphi 0, %s24
      %s38 = sphi 0, %s40
      %s41 = sphi 0, %s38
      %s42 = sphi 0, %s41
      %s58 = sphi 0, %s42
      %s64 = sphi 0, %s66
      %s67 = sphi 0, %s64
      %s68 = sphi 0, %s67
      %s84 = sphi 0, %s68
      %s90 = sphi 0, %s92
      %s93 = sphi 0, %s90
      %s94 = sphi 0, %s93
      %s110 = sphi 0, %s94
      %s118 = sphi 0, %s120
      %s121 = sphi 0, %s118
      %s122 = sphi 0, %s121
      %s138 = sphi 0, %s122
      %s144 = sphi 0, %s146
      %s147 = sphi 0, %s144
      %s148 = sphi 0, %s147
      %s164 = sphi 0, %s148
    $region4: #{_lambda_.4} parent=1 // loop_header_branch
      %17 = sbr.rel (%p15) target = $region8
    $region5: #{_lambda_.4} parent=1 // loop_body
      %s19 = ssub.s32 %s14, 1
      %s20 = ssub.s32 %s14, 2
      %s27 = sadd.s32 1, %s22
      %p28 = scmp.ge.s32.totalorder %s27, 1
      %s29 = scalar_select %p28, 0, %s27
      %s30 = sadd.s32 1, %s21
      %s31 = scalar_select %p28, %s30, %s21
      %p32 = scmp.ge.s32.totalorder %s31, 2
      %s33 = scalar_select %p32, 0, %s31
      %s34 = ssub.s32 %s21, %s33
      %s35 = ssub.s32 %s22, %s29
      %s36 = sor.u32 %s34, %s35
      %p37 = scmp.eq.s32.totalorder %s36, 0
      %s39 = sadd.s32 %s38, 1
      %s40 = scalar_select %p37, %s38, %s39
      %p43 = pneg %p37
      %p44 = scmp.eq.s32.totalorder %s14, 1
      %p45 = por %p43, %p44
      %p46 = scmp.ne.s32.totalorder %s38, %s41
      %p47 = scmp.eq.s32.totalorder %s14, 0
      %p48 = por %p46, %p47
      %p49 = scmp.ne.s32.totalorder %s38, %s41
      %p50 = scmp.eq.s32.totalorder %s19, 1
      %p51 = por %p49, %p50
      %p52 = scmp.ne.s32.totalorder %s41, %s42
      %p53 = scmp.eq.s32.totalorder %s19, 0
      %p54 = por %p52, %p53
      %p55 = scmp.ne.s32.totalorder %s41, %s42
      %p56 = scmp.eq.s32.totalorder %s20, 1
      %p57 = por %p55, %p56
      %p59 = scmp.ne.s32.totalorder %s42, %s58
      %p60 = scmp.eq.s32.totalorder %s20, 0
      %p61 = por %p59, %p60
      %s62 = ssub.s32 %s21, %s33
      %p63 = scmp.eq.s32.totalorder %s62, 0
      %s65 = sadd.s32 %s64, 1
      %s66 = scalar_select %p63, %s64, %s65
      %p69 = pneg %p63
      %p70 = scmp.eq.s32.totalorder %s14, 1
      %p71 = por %p69, %p70
      %p72 = scmp.ne.s32.totalorder %s64, %s67
      %p73 = scmp.eq.s32.totalorder %s14, 0
      %p74 = por %p72, %p73
      %p75 = scmp.ne.s32.totalorder %s64, %s67
      %p76 = scmp.eq.s32.totalorder %s19, 1
      %p77 = por %p75, %p76
      %p78 = scmp.ne.s32.totalorder %s67, %s68
      %p79 = scmp.eq.s32.totalorder %s19, 0
      %p80 = por %p78, %p79
      %p81 = scmp.ne.s32.totalorder %s67, %s68
      %p82 = scmp.eq.s32.totalorder %s20, 1
      %p83 = por %p81, %p82
      %p85 = scmp.ne.s32.totalorder %s68, %s84
      %p86 = scmp.eq.s32.totalorder %s20, 0
      %p87 = por %p85, %p86
      %s88 = ssub.s32 %s21, %s33
      %p89 = scmp.eq.s32.totalorder %s88, 0
      %s91 = sadd.s32 %s90, 1
      %s92 = scalar_select %p89, %s90, %s91
      %p95 = pneg %p89
      %p96 = scmp.eq.s32.totalorder %s14, 1
      %p97 = por %p95, %p96
      %p98 = scmp.ne.s32.totalorder %s90, %s93
      %p99 = scmp.eq.s32.totalorder %s14, 0
      %p100 = por %p98, %p99
      %p101 = scmp.ne.s32.totalorder %s90, %s93
      %p102 = scmp.eq.s32.totalorder %s19, 1
      %p103 = por %p101, %p102
      %p104 = scmp.ne.s32.totalorder %s93, %s94
      %p105 = scmp.eq.s32.totalorder %s19, 0
      %p106 = por %p104, %p105
      %p107 = scmp.ne.s32.totalorder %s93, %s94
      %p108 = scmp.eq.s32.totalorder %s20, 1
      %p109 = por %p107, %p108
      %p111 = scmp.ne.s32.totalorder %s94, %s110
      %p112 = scmp.eq.s32.totalorder %s20, 0
      %p113 = por %p111, %p112
      %s114 = ssub.s32 %s21, %s33
      %s115 = ssub.s32 %s22, %s29
      %s116 = sor.u32 %s114, %s115
      %p117 = scmp.eq.s32.totalorder %s116, 0
      %s119 = sadd.s32 %s118, 1
      %s120 = scalar_select %p117, %s118, %s119
      %p123 = pneg %p117
      %p124 = scmp.eq.s32.totalorder %s14, 1
      %p125 = por %p123, %p124
      %p126 = scmp.ne.s32.totalorder %s118, %s121
      %p127 = scmp.eq.s32.totalorder %s14, 0
      %p128 = por %p126, %p127
      %p129 = scmp.ne.s32.totalorder %s118, %s121
      %p130 = scmp.eq.s32.totalorder %s19, 1
      %p131 = por %p129, %p130
      %p132 = scmp.ne.s32.totalorder %s121, %s122
      %p133 = scmp.eq.s32.totalorder %s19, 0
      %p134 = por %p132, %p133
      %p135 = scmp.ne.s32.totalorder %s121, %s122
      %p136 = scmp.eq.s32.totalorder %s20, 1
      %p137 = por %p135, %p136
      %p139 = scmp.ne.s32.totalorder %s122, %s138
      %p140 = scmp.eq.s32.totalorder %s20, 0
      %p141 = por %p139, %p140
      %s142 = ssub.s32 %s21, %s33
      %p143 = scmp.eq.s32.totalorder %s142, 0
      %s145 = sadd.s32 %s144, 1
      %s146 = scalar_select %p143, %s144, %s145
      %p149 = pneg %p143
      %p150 = scmp.eq.s32.totalorder %s14, 1
      %p151 = por %p149, %p150
      %p152 = scmp.ne.s32.totalorder %s144, %s147
      %p153 = scmp.eq.s32.totalorder %s14, 0
      %p154 = por %p152, %p153
      %p155 = scmp.ne.s32.totalorder %s144, %s147
      %p156 = scmp.eq.s32.totalorder %s19, 1
      %p157 = por %p155, %p156
      %p158 = scmp.ne.s32.totalorder %s147, %s148
      %p159 = scmp.eq.s32.totalorder %s19, 0
      %p160 = por %p158, %p159
      %p161 = scmp.ne.s32.totalorder %s147, %s148
      %p162 = scmp.eq.s32.totalorder %s20, 1
      %p163 = por %p161, %p162
      %p165 = scmp.ne.s32.totalorder %s148, %s164
      %p166 = scmp.eq.s32.totalorder %s20, 0
      %p167 = por %p165, %p166
      %p168 = scmp.le.s32.totalorder 1, %s14
      %p169 = scmp.lt.s32.totalorder %s14, 3
      %p170 = pnand %p168, %p169
      %p171 = pneg %p170
      // Predicated region
      $region9: #{_lambda_.4} parent=5 // pred_check
        _
      $region10: #{_lambda_.4} parent=5 // pred_check_branch
        %173 = sbr.rel (%p170) target = $region12
      $region11: #{_lambda_.4} parent=5 // pred_region
        %s174 = ssub.s32 %s14, 1
      $region12: #{_lambda_.4} parent=5 // pred_fallthru
        _
      %p175 = scmp.lt.s32.totalorder %s14, 2
      // Predicated region
      $region13: #{_lambda_.4} parent=5 // pred_check
        %p176 = pneg %p175
      $region14: #{_lambda_.4} parent=5 // pred_check_branch
        %178 = sbr.rel (%p176) target = $region16
      $region15: #{_lambda_.4} parent=5 // pred_region
        // Predicated region
        $region17: #{_lambda_.4} parent=15 // pred_check
          %p179 = pneg %p48
        $region18: #{_lambda_.4} parent=15 // pred_check_branch
          %181 = sbr.rel (%p179) target = $region20
        $region19: #{_lambda_.4} parent=15 // pred_region
          %s182 = smul.u32 4, %s21
          %p183 = scmp.lt.s32.totalorder %s182, 7
          %s184 = scalar_select %p183, %s182, 7
          %p185 = scmp.lt.s32.totalorder %s22, 0
          %s186 = scalar_select %p185, %s22, 0
          %s187 = sadd.s32 %s186, %s184
          %s188 = smul.addr %s187, 8
          %s189 = scalar_lea.vmem %s0, %s188
          %s190 = smul.u32 4, %s21
        $region20: #{_lambda_.4} parent=15 // pred_fallthru
          _
        // Predicated region
        $region21: #{_lambda_.4} parent=15 // pred_check
          %p191 = pneg %p74
        $region22: #{_lambda_.4} parent=15 // pred_check_branch
          %193 = sbr.rel (%p191) target = $region24
        $region23: #{_lambda_.4} parent=15 // pred_region
          %s194 = smul.u32 4, %s21
          %p195 = scmp.lt.s32.totalorder %s194, 7
          %s196 = scalar_select %p195, %s194, 7
          %s197 = smul.addr %s196, 8
          %s198 = scalar_lea.vmem %s1, %s197
          %s199 = smul.u32 4, %s21
        $region24: #{_lambda_.4} parent=15 // pred_fallthru
          _
        // Predicated region
        $region25: #{_lambda_.4} parent=15 // pred_check
          %p200 = pneg %p100
        $region26: #{_lambda_.4} parent=15 // pred_check_branch
          %202 = sbr.rel (%p200) target = $region28
        $region27: #{_lambda_.4} parent=15 // pred_region
          %s203 = smul.u32 4, %s21
          %p204 = scmp.lt.s32.totalorder %s203, 7
          %s205 = scalar_select %p204, %s203, 7
          %s206 = smul.addr %s205, 8
          %s207 = scalar_lea.vmem %s2, %s206
          %s208 = smul.u32 4, %s21
        $region28: #{_lambda_.4} parent=15 // pred_fallthru
          _
      $region16: #{_lambda_.4} parent=5 // pred_fallthru
        _
      %p209 = scmp.le.s32.totalorder 1, %s14
      %p210 = scmp.lt.s32.totalorder %s14, 3
      %p211 = pnand %p209, %p210
      %p212 = pneg %p211
      // Predicated region
      $region29: #{_lambda_.4} parent=5 // pred_check
        _
      $region30: #{_lambda_.4} parent=5 // pred_check_branch
        %214 = sbr.rel (%p211) target = $region32
      $region31: #{_lambda_.4} parent=5 // pred_region
        %s215 = ssub.s32 %s14, 1
        %s216 = smul.u32 4, %s23
        %p217 = scmp.lt.s32.totalorder %s216, 7
        %s218 = scalar_select %p217, %s216, 7
        %p219 = scmp.lt.s32.totalorder %s24, 0
        %s220 = scalar_select %p219, %s24, 0
        %s221 = sadd.s32 %s220, %s218
        %s222 = smul.addr %s221, 8
        %s223 = scalar_lea.vmem %s0, %s222
        %p224 = pneg %p54
        %p225 = pneg %p51
        %s226 = smul.u32 4, %s23
        %p227 = scmp.lt.s32.totalorder %s226, 7
        %s228 = scalar_select %p227, %s226, 7
        %s229 = smul.addr %s228, 8
        %s230 = scalar_lea.vmem %s1, %s229
        %p231 = pneg %p80
        %p232 = pneg %p77
        %s233 = smul.u32 4, %s23
        %p234 = scmp.lt.s32.totalorder %s233, 7
        %s235 = scalar_select %p234, %s233, 7
        %s236 = smul.addr %s235, 8
        %s237 = scalar_lea.vmem %s2, %s236
        %p238 = pneg %p106
        %p239 = pneg %p103
        %p240 = pneg %p134
        %p241 = pneg %p131
        %s242 = smul.u32 4, %s23
        %p243 = scmp.lt.s32.totalorder %s242, 7
        %s244 = scalar_select %p243, %s242, 7
        %p245 = scmp.lt.s32.totalorder %s24, 0
        %s246 = scalar_select %p245, %s24, 0
        %s247 = sadd.s32 %s246, %s244
        %s248 = smul.addr %s247, 8
        %s249 = scalar_lea.vmem %s3, %s248
        %p250 = pneg %p160
        %p251 = pneg %p157
        %s252 = sand.u32 %s147, 1
        %s253 = scalar_lea.sflag [#allocation3], %s252
        %s254 = sand.u32 %s147, 1
        %s255 = smul.addr %s254, 4
        %s256 = scalar_lea.vmem [#allocation2], %s255
        %s257 = smul.u32 4, %s23
        %p258 = scmp.lt.s32.totalorder %s257, 7
        %s259 = scalar_select %p258, %s257, 7
        %p260 = scmp.lt.s32.totalorder %s24, 0
        %s261 = scalar_select %p260, %s24, 0
        %s262 = sadd.s32 %s261, %s259
        %s263 = smul.addr %s262, 8
        %s264 = scalar_lea.vmem %s0, %s263
        %s265 = smul.u32 4, %s23
        %s266 = smul.u32 4, %s23
        %p267 = scmp.lt.s32.totalorder %s266, 7
        %s268 = scalar_select %p267, %s266, 7
        %s269 = smul.addr %s268, 8
        %s270 = scalar_lea.vmem %s1, %s269
        %s271 = smul.u32 4, %s23
        %s272 = smul.u32 4, %s23
        %p273 = scmp.lt.s32.totalorder %s272, 7
        %s274 = scalar_select %p273, %s272, 7
        %s275 = smul.addr %s274, 8
        %s276 = scalar_lea.vmem %s2, %s275
        %s277 = smul.u32 4, %s23
        %s278 = smul.u32 4, %s23
        %p279 = scmp.lt.s32.totalorder %s278, 7
        %s280 = scalar_select %p279, %s278, 7
        %p281 = scmp.lt.s32.totalorder %s24, 0
        %s282 = scalar_select %p281, %s24, 0
        %s283 = sadd.s32 %s282, %s280
        %s284 = smul.addr %s283, 8
        %s285 = scalar_lea.vmem %s3, %s284
        %s286 = smul.u32 4, %s23
        %s287 = smul.u32 4, %s23
        %v288 = vld [vmem:[%s264] sm:$0xff]
        %v289 = vld [vmem:[%s264 + $0x8] sm:$0xff]
        %v290 = vld [vmem:[%s264 + $0x10] sm:$0xff]
        %v291 = vld [vmem:[%s264 + $0x18] sm:$0xff]
        %v292 = vmul.f32 %v288, 0.35355338
        %v293 = vmul.f32 %v289, 0.35355338
        %v294 = vmul.f32 %v290, 0.35355338
        %v295 = vmul.f32 %v291, 0.35355338
        %v296 = vld [vmem:[%s270] sm:$0xff]
        %v297 = vld [vmem:[%s270 + $0x8] sm:$0xff]
        %v298 = vld [vmem:[%s270 + $0x10] sm:$0xff]
        %v299 = vld [vmem:[%s270 + $0x18] sm:$0xff]
        %v300 = vld [vmem:[%s276] sm:$0xff]
        %v301 = vld [vmem:[%s276 + $0x8] sm:$0xff]
        %v302 = vld [vmem:[%s276 + $0x10] sm:$0xff]
        %v303 = vld [vmem:[%s276 + $0x18] sm:$0xff]
        %vm304 = vcmask 64512
        %v306 = vsel %vm304, %v292, 0
        %v309 = vsel %vm304, %v296, 0
        %311 = vmatprep.subr.mxu0 0.0
        %312 = vmatpush1.xpose.msra.mxu0 0.0
        %313 = vmatprep.subr.mxu0 0.0
        %314 = vmatpush1.xpose.msra.mxu0 0.0
        %315 = vmatprep.subr.mxu0 0.0
        %316 = vmatpush1.xpose.msra.mxu0 0.0
        %317 = vmatprep.subr.mxu0 0.0
        %318 = vmatpush1.xpose.msra.mxu0 0.0
        %319 = vmatprep.subr.mxu0 0.0
        %320 = vmatpush1.xpose.msra.mxu0 0.0
        %321 = vmatprep.subr.mxu0 0.0
        %322 = vmatpush1.xpose.msra.mxu0 0.0
        %323 = vmatprep.subr.mxu0 0.0
        %324 = vmatpush1.xpose.msra.mxu0 0.0
        %325 = vmatprep.subr.mxu0 0.0
        %326 = vmatpush1.xpose.msra.mxu0 0.0
        %327 = vmatprep.subr.mxu0 0.0
        %328 = vmatpush1.xpose.msra.mxu0 0.0
        %329 = vmatprep.subr.mxu0 0.0
        %330 = vmatpush1.xpose.msra.mxu0 0.0
        %331 = vmatprep.subr.mxu0 0.0
        %332 = vmatpush1.xpose.msra.mxu0 0.0
        %333 = vmatprep.subr.mxu0 0.0
        %334 = vmatpush1.xpose.msra.mxu0 0.0
        %335 = vmatprep.subr.mxu0 0.0
        %336 = vmatpush1.xpose.msra.mxu0 0.0
        %337 = vmatprep.subr.mxu0 0.0
        %338 = vmatpush1.xpose.msra.mxu0 0.0
        %339 = vmatprep.subr.mxu0 0.0
        %340 = vmatpush1.xpose.msra.mxu0 0.0
        %341 = vmatprep.subr.mxu0 0.0
        %342 = vmatpush1.xpose.msra.mxu0 %v309
        %343 = vmatprep.subr.mxu0 0.0
        %344 = vmatpush2.xpose.msra.mxu0 0.0
        %345 = vmatprep.subr.mxu0 0.0
        %346 = vmatpush2.xpose.msra.mxu0 0.0
        %347 = vmatprep.subr.mxu0 0.0
        %348 = vmatpush2.xpose.msra.mxu0 0.0
        %349 = vmatprep.subr.mxu0 0.0
        %350 = vmatpush2.xpose.msra.mxu0 0.0
        %351 = vmatprep.subr.mxu0 0.0
        %352 = vmatpush2.xpose.msra.mxu0 0.0
        %353 = vmatprep.subr.mxu0 0.0
        %354 = vmatpush2.xpose.msra.mxu0 0.0
        %355 = vmatprep.subr.mxu0 0.0
        %356 = vmatpush2.xpose.msra.mxu0 0.0
        %357 = vmatprep.subr.mxu0 0.0
        %358 = vmatpush2.xpose.msra.mxu0 0.0
        %359 = vmatprep.subr.mxu0 0.0
        %360 = vmatpush2.xpose.msra.mxu0 0.0
        %361 = vmatprep.subr.mxu0 0.0
        %362 = vmatpush2.xpose.msra.mxu0 0.0
        %363 = vmatprep.subr.mxu0 0.0
        %364 = vmatpush2.xpose.msra.mxu0 0.0
        %365 = vmatprep.subr.mxu0 0.0
        %366 = vmatpush2.xpose.msra.mxu0 0.0
        %367 = vmatprep.subr.mxu0 0.0
        %368 = vmatpush2.xpose.msra.mxu0 0.0
        %369 = vmatprep.subr.mxu0 0.0
        %370 = vmatpush2.xpose.msra.mxu0 0.0
        %371 = vmatprep.subr.mxu0 0.0
        %372 = vmatpush2.xpose.msra.mxu0 0.0
        %373 = vmatprep.subr.mxu0 0.0
        %374 = vmatpush2.xpose.msra.mxu0 0.0
        %375 = vmatprep.mubr.f32.mxu0 0.0
        %376 = vmatmul.mubr.f32.gmra.mxu0 %v306
        %v377 = vpop.f32.mrf.mxu0
        %v378 = vadd.f32 0.0, %v377
        %v379 = vpop.f32.mrf.mxu0
        %380 = vdwg.mxu0
        %v382 = vsel %vm304, %v293, 0
        %v385 = vsel %vm304, %v297, 0
        %387 = vmatprep.subr.mxu0 0.0
        %388 = vmatpush1.xpose.msra.mxu0 0.0
        %389 = vmatprep.subr.mxu0 0.0
        %390 = vmatpush1.xpose.msra.mxu0 0.0
        %391 = vmatprep.subr.mxu0 0.0
        %392 = vmatpush1.xpose.msra.mxu0 0.0
        %393 = vmatprep.subr.mxu0 0.0
        %394 = vmatpush1.xpose.msra.mxu0 0.0
        %395 = vmatprep.subr.mxu0 0.0
        %396 = vmatpush1.xpose.msra.mxu0 0.0
        %397 = vmatprep.subr.mxu0 0.0
        %398 = vmatpush1.xpose.msra.mxu0 0.0
        %399 = vmatprep.subr.mxu0 0.0
        %400 = vmatpush1.xpose.msra.mxu0 0.0
        %401 = vmatprep.subr.mxu0 0.0
        %402 = vmatpush1.xpose.msra.mxu0 0.0
        %403 = vmatprep.subr.mxu0 0.0
        %404 = vmatpush1.xpose.msra.mxu0 0.0
        %405 = vmatprep.subr.mxu0 0.0
        %406 = vmatpush1.xpose.msra.mxu0 0.0
        %407 = vmatprep.subr.mxu0 0.0
        %408 = vmatpush1.xpose.msra.mxu0 0.0
        %409 = vmatprep.subr.mxu0 0.0
        %410 = vmatpush1.xpose.msra.mxu0 0.0
        %411 = vmatprep.subr.mxu0 0.0
        %412 = vmatpush1.xpose.msra.mxu0 0.0
        %413 = vmatprep.subr.mxu0 0.0
        %414 = vmatpush1.xpose.msra.mxu0 0.0
        %415 = vmatprep.subr.mxu0 0.0
        %416 = vmatpush1.xpose.msra.mxu0 0.0
        %417 = vmatprep.subr.mxu0 0.0
        %418 = vmatpush1.xpose.msra.mxu0 %v385
        %419 = vmatprep.subr.mxu0 0.0
        %420 = vmatpush2.xpose.msra.mxu0 0.0
        %421 = vmatprep.subr.mxu0 0.0
        %422 = vmatpush2.xpose.msra.mxu0 0.0
        %423 = vmatprep.subr.mxu0 0.0
        %424 = vmatpush2.xpose.msra.mxu0 0.0
        %425 = vmatprep.subr.mxu0 0.0
        %426 = vmatpush2.xpose.msra.mxu0 0.0
        %427 = vmatprep.subr.mxu0 0.0
        %428 = vmatpush2.xpose.msra.mxu0 0.0
        %429 = vmatprep.subr.mxu0 0.0
        %430 = vmatpush2.xpose.msra.mxu0 0.0
        %431 = vmatprep.subr.mxu0 0.0
        %432 = vmatpush2.xpose.msra.mxu0 0.0
        %433 = vmatprep.subr.mxu0 0.0
        %434 = vmatpush2.xpose.msra.mxu0 0.0
        %435 = vmatprep.subr.mxu0 0.0
        %436 = vmatpush2.xpose.msra.mxu0 0.0
        %437 = vmatprep.subr.mxu0 0.0
        %438 = vmatpush2.xpose.msra.mxu0 0.0
        %439 = vmatprep.subr.mxu0 0.0
        %440 = vmatpush2.xpose.msra.mxu0 0.0
        %441 = vmatprep.subr.mxu0 0.0
        %442 = vmatpush2.xpose.msra.mxu0 0.0
        %443 = vmatprep.subr.mxu0 0.0
        %444 = vmatpush2.xpose.msra.mxu0 0.0
        %445 = vmatprep.subr.mxu0 0.0
        %446 = vmatpush2.xpose.msra.mxu0 0.0
        %447 = vmatprep.subr.mxu0 0.0
        %448 = vmatpush2.xpose.msra.mxu0 0.0
        %449 = vmatprep.subr.mxu0 0.0
        %450 = vmatpush2.xpose.msra.mxu0 0.0
        %451 = vmatprep.mubr.f32.mxu0 0.0
        %452 = vmatmul.mubr.f32.gmra.mxu0 %v382
        %v453 = vpop.f32.mrf.mxu0
        %v454 = vadd.f32 0.0, %v453
        %v455 = vpop.f32.mrf.mxu0
        %456 = vdwg.mxu0
        %v458 = vsel %vm304, %v294, 0
        %v461 = vsel %vm304, %v298, 0
        %463 = vmatprep.subr.mxu0 0.0
        %464 = vmatpush1.xpose.msra.mxu0 0.0
        %465 = vmatprep.subr.mxu0 0.0
        %466 = vmatpush1.xpose.msra.mxu0 0.0
        %467 = vmatprep.subr.mxu0 0.0
        %468 = vmatpush1.xpose.msra.mxu0 0.0
        %469 = vmatprep.subr.mxu0 0.0
        %470 = vmatpush1.xpose.msra.mxu0 0.0
        %471 = vmatprep.subr.mxu0 0.0
        %472 = vmatpush1.xpose.msra.mxu0 0.0
        %473 = vmatprep.subr.mxu0 0.0
        %474 = vmatpush1.xpose.msra.mxu0 0.0
        %475 = vmatprep.subr.mxu0 0.0
        %476 = vmatpush1.xpose.msra.mxu0 0.0
        %477 = vmatprep.subr.mxu0 0.0
        %478 = vmatpush1.xpose.msra.mxu0 0.0
        %479 = vmatprep.subr.mxu0 0.0
        %480 = vmatpush1.xpose.msra.mxu0 0.0
        %481 = vmatprep.subr.mxu0 0.0
        %482 = vmatpush1.xpose.msra.mxu0 0.0
        %483 = vmatprep.subr.mxu0 0.0
        %484 = vmatpush1.xpose.msra.mxu0 0.0
        %485 = vmatprep.subr.mxu0 0.0
        %486 = vmatpush1.xpose.msra.mxu0 0.0
        %487 = vmatprep.subr.mxu0 0.0
        %488 = vmatpush1.xpose.msra.mxu0 0.0
        %489 = vmatprep.subr.mxu0 0.0
        %490 = vmatpush1.xpose.msra.mxu0 0.0
        %491 = vmatprep.subr.mxu0 0.0
        %492 = vmatpush1.xpose.msra.mxu0 0.0
        %493 = vmatprep.subr.mxu0 0.0
        %494 = vmatpush1.xpose.msra.mxu0 %v461
        %495 = vmatprep.subr.mxu0 0.0
        %496 = vmatpush2.xpose.msra.mxu0 0.0
        %497 = vmatprep.subr.mxu0 0.0
        %498 = vmatpush2.xpose.msra.mxu0 0.0
        %499 = vmatprep.subr.mxu0 0.0
        %500 = vmatpush2.xpose.msra.mxu0 0.0
        %501 = vmatprep.subr.mxu0 0.0
        %502 = vmatpush2.xpose.msra.mxu0 0.0
        %503 = vmatprep.subr.mxu0 0.0
        %504 = vmatpush2.xpose.msra.mxu0 0.0
        %505 = vmatprep.subr.mxu0 0.0
        %506 = vmatpush2.xpose.msra.mxu0 0.0
        %507 = vmatprep.subr.mxu0 0.0
        %508 = vmatpush2.xpose.msra.mxu0 0.0
        %509 = vmatprep.subr.mxu0 0.0
        %510 = vmatpush2.xpose.msra.mxu0 0.0
        %511 = vmatprep.subr.mxu0 0.0
        %512 = vmatpush2.xpose.msra.mxu0 0.0
        %513 = vmatprep.subr.mxu0 0.0
        %514 = vmatpush2.xpose.msra.mxu0 0.0
        %515 = vmatprep.subr.mxu0 0.0
        %516 = vmatpush2.xpose.msra.mxu0 0.0
        %517 = vmatprep.subr.mxu0 0.0
        %518 = vmatpush2.xpose.msra.mxu0 0.0
        %519 = vmatprep.subr.mxu0 0.0
        %520 = vmatpush2.xpose.msra.mxu0 0.0
        %521 = vmatprep.subr.mxu0 0.0
        %522 = vmatpush2.xpose.msra.mxu0 0.0
        %523 = vmatprep.subr.mxu0 0.0
        %524 = vmatpush2.xpose.msra.mxu0 0.0
        %525 = vmatprep.subr.mxu0 0.0
        %526 = vmatpush2.xpose.msra.mxu0 0.0
        %527 = vmatprep.mubr.f32.mxu0 0.0
        %528 = vmatmul.mubr.f32.gmra.mxu0 %v458
        %v529 = vpop.f32.mrf.mxu0
        %v530 = vadd.f32 0.0, %v529
        %v531 = vpop.f32.mrf.mxu0
        %532 = vdwg.mxu0
        %v534 = vsel %vm304, %v295, 0
        %v537 = vsel %vm304, %v299, 0
        %539 = vmatprep.subr.mxu0 0.0
        %540 = vmatpush1.xpose.msra.mxu0 0.0
        %541 = vmatprep.subr.mxu0 0.0
        %542 = vmatpush1.xpose.msra.mxu0 0.0
        %543 = vmatprep.subr.mxu0 0.0
        %544 = vmatpush1.xpose.msra.mxu0 0.0
        %545 = vmatprep.subr.mxu0 0.0
        %546 = vmatpush1.xpose.msra.mxu0 0.0
        %547 = vmatprep.subr.mxu0 0.0
        %548 = vmatpush1.xpose.msra.mxu0 0.0
        %549 = vmatprep.subr.mxu0 0.0
        %550 = vmatpush1.xpose.msra.mxu0 0.0
        %551 = vmatprep.subr.mxu0 0.0
        %552 = vmatpush1.xpose.msra.mxu0 0.0
        %553 = vmatprep.subr.mxu0 0.0
        %554 = vmatpush1.xpose.msra.mxu0 0.0
        %555 = vmatprep.subr.mxu0 0.0
        %556 = vmatpush1.xpose.msra.mxu0 0.0
        %557 = vmatprep.subr.mxu0 0.0
        %558 = vmatpush1.xpose.msra.mxu0 0.0
        %559 = vmatprep.subr.mxu0 0.0
        %560 = vmatpush1.xpose.msra.mxu0 0.0
        %561 = vmatprep.subr.mxu0 0.0
        %562 = vmatpush1.xpose.msra.mxu0 0.0
        %563 = vmatprep.subr.mxu0 0.0
        %564 = vmatpush1.xpose.msra.mxu0 0.0
        %565 = vmatprep.subr.mxu0 0.0
        %566 = vmatpush1.xpose.msra.mxu0 0.0
        %567 = vmatprep.subr.mxu0 0.0
        %568 = vmatpush1.xpose.msra.mxu0 0.0
        %569 = vmatprep.subr.mxu0 0.0
        %570 = vmatpush1.xpose.msra.mxu0 %v537
        %571 = vmatprep.subr.mxu0 0.0
        %572 = vmatpush2.xpose.msra.mxu0 0.0
        %573 = vmatprep.subr.mxu0 0.0
        %574 = vmatpush2.xpose.msra.mxu0 0.0
        %575 = vmatprep.subr.mxu0 0.0
        %576 = vmatpush2.xpose.msra.mxu0 0.0
        %577 = vmatprep.subr.mxu0 0.0
        %578 = vmatpush2.xpose.msra.mxu0 0.0
        %579 = vmatprep.subr.mxu0 0.0
        %580 = vmatpush2.xpose.msra.mxu0 0.0
        %581 = vmatprep.subr.mxu0 0.0
        %582 = vmatpush2.xpose.msra.mxu0 0.0
        %583 = vmatprep.subr.mxu0 0.0
        %584 = vmatpush2.xpose.msra.mxu0 0.0
        %585 = vmatprep.subr.mxu0 0.0
        %586 = vmatpush2.xpose.msra.mxu0 0.0
        %587 = vmatprep.subr.mxu0 0.0
        %588 = vmatpush2.xpose.msra.mxu0 0.0
        %589 = vmatprep.subr.mxu0 0.0
        %590 = vmatpush2.xpose.msra.mxu0 0.0
        %591 = vmatprep.subr.mxu0 0.0
        %592 = vmatpush2.xpose.msra.mxu0 0.0
        %593 = vmatprep.subr.mxu0 0.0
        %594 = vmatpush2.xpose.msra.mxu0 0.0
        %595 = vmatprep.subr.mxu0 0.0
        %596 = vmatpush2.xpose.msra.mxu0 0.0
        %597 = vmatprep.subr.mxu0 0.0
        %598 = vmatpush2.xpose.msra.mxu0 0.0
        %599 = vmatprep.subr.mxu0 0.0
        %600 = vmatpush2.xpose.msra.mxu0 0.0
        %601 = vmatprep.subr.mxu0 0.0
        %602 = vmatpush2.xpose.msra.mxu0 0.0
        %603 = vmatprep.mubr.f32.mxu0 0.0
        %604 = vmatmul.mubr.f32.gmra.mxu0 %v534
        %v605 = vpop.f32.mrf.mxu0
        %v606 = vadd.f32 0.0, %v605
        %v607 = vpop.f32.mrf.mxu0
        %608 = vdwg.mxu0
        %v609 = vsel %vm304, %v378, -inf
        %610 = vmax.xlane.f32.xlu0 %v609
        %v611 = vpop.xlane.xlu0 %610
        %v612 = vsel %vm304, %v454, -inf
        %613 = vmax.xlane.f32.xlu0 %v612
        %v614 = vpop.xlane.xlu0 %613
        %v615 = vsel %vm304, %v530, -inf
        %616 = vmax.xlane.f32.xlu0 %v615
        %v617 = vpop.xlane.xlu0 %616
        %v618 = vsel %vm304, %v606, -inf
        %619 = vmax.xlane.f32.xlu0 %v618
        %v620 = vpop.xlane.xlu0 %619
        %v621 = vsub.f32 %v378, %v611
        %v622 = vsub.f32 %v454, %v614
        %v623 = vsub.f32 %v530, %v617
        %v624 = vsub.f32 %v606, %v620
        %v625 = vmul.f32 %v621, 1.442695
        %v626 = vpow.pop %v625
        %v627 = vmul.f32 %v622, 1.442695
        %v628 = vpow.pop %v627
        %v629 = vmul.f32 %v623, 1.442695
        %v630 = vpow.pop %v629
        %v631 = vmul.f32 %v624, 1.442695
        %v632 = vpow.pop %v631
        %v633 = vsel %vm304, %v626, 0.0
        %634 = vadd.xlane.f32.xlu0 %v633
        %v635 = vpop.xlane.xlu0 %634
        %v636 = vsel %vm304, %v628, 0.0
        %637 = vadd.xlane.f32.xlu0 %v636
        %v638 = vpop.xlane.xlu0 %637
        %v639 = vsel %vm304, %v630, 0.0
        %640 = vadd.xlane.f32.xlu0 %v639
        %v641 = vpop.xlane.xlu0 %640
        %v642 = vsel %vm304, %v632, 0.0
        %643 = vadd.xlane.f32.xlu0 %v642
        %v644 = vpop.xlane.xlu0 %643
        %v645 = vrcp.pop %v635
        %v646 = vmul.f32 1.0, %v645
        %v647 = vrcp.pop %v638
        %v648 = vmul.f32 1.0, %v647
        %v649 = vrcp.pop %v641
        %v650 = vmul.f32 1.0, %v649
        %v651 = vrcp.pop %v644
        %v652 = vmul.f32 1.0, %v651
        %v654 = vsel %vm304, %v626, 0
        %656 = vmatprep.subr.mxu0 0.0
        %657 = vmatpush1.msra.mxu0 0.0
        %658 = vmatprep.subr.mxu0 0.0
        %659 = vmatpush1.msra.mxu0 0.0
        %660 = vmatprep.subr.mxu0 0.0
        %661 = vmatpush1.msra.mxu0 0.0
        %662 = vmatprep.subr.mxu0 0.0
        %663 = vmatpush1.msra.mxu0 0.0
        %664 = vmatprep.subr.mxu0 0.0
        %665 = vmatpush1.msra.mxu0 0.0
        %666 = vmatprep.subr.mxu0 0.0
        %667 = vmatpush1.msra.mxu0 0.0
        %668 = vmatprep.subr.mxu0 0.0
        %669 = vmatpush1.msra.mxu0 0.0
        %670 = vmatprep.subr.mxu0 0.0
        %671 = vmatpush1.msra.mxu0 0.0
        %672 = vmatprep.subr.mxu0 0.0
        %673 = vmatpush1.msra.mxu0 0.0
        %674 = vmatprep.subr.mxu0 0.0
        %675 = vmatpush1.msra.mxu0 0.0
        %676 = vmatprep.subr.mxu0 0.0
        %677 = vmatpush1.msra.mxu0 0.0
        %678 = vmatprep.subr.mxu0 0.0
        %679 = vmatpush1.msra.mxu0 0.0
        %680 = vmatprep.subr.mxu0 0.0
        %681 = vmatpush1.msra.mxu0 0.0
        %682 = vmatprep.subr.mxu0 0.0
        %683 = vmatpush1.msra.mxu0 0.0
        %684 = vmatprep.subr.mxu0 0.0
        %685 = vmatpush1.msra.mxu0 0.0
        %686 = vmatprep.subr.mxu0 0.0
        %687 = vmatpush1.msra.mxu0 %v300
        %688 = vmatprep.subr.mxu0 0.0
        %689 = vmatpush2.msra.mxu0 0.0
        %690 = vmatprep.subr.mxu0 0.0
        %691 = vmatpush2.msra.mxu0 0.0
        %692 = vmatprep.subr.mxu0 0.0
        %693 = vmatpush2.msra.mxu0 0.0
        %694 = vmatprep.subr.mxu0 0.0
        %695 = vmatpush2.msra.mxu0 0.0
        %696 = vmatprep.subr.mxu0 0.0
        %697 = vmatpush2.msra.mxu0 0.0
        %698 = vmatprep.subr.mxu0 0.0
        %699 = vmatpush2.msra.mxu0 0.0
        %700 = vmatprep.subr.mxu0 0.0
        %701 = vmatpush2.msra.mxu0 0.0
        %702 = vmatprep.subr.mxu0 0.0
        %703 = vmatpush2.msra.mxu0 0.0
        %704 = vmatprep.subr.mxu0 0.0
        %705 = vmatpush2.msra.mxu0 0.0
        %706 = vmatprep.subr.mxu0 0.0
        %707 = vmatpush2.msra.mxu0 0.0
        %708 = vmatprep.subr.mxu0 0.0
        %709 = vmatpush2.msra.mxu0 0.0
        %710 = vmatprep.subr.mxu0 0.0
        %711 = vmatpush2.msra.mxu0 0.0
        %712 = vmatprep.subr.mxu0 0.0
        %713 = vmatpush2.msra.mxu0 0.0
        %714 = vmatprep.subr.mxu0 0.0
        %715 = vmatpush2.msra.mxu0 0.0
        %716 = vmatprep.subr.mxu0 0.0
        %717 = vmatpush2.msra.mxu0 0.0
        %718 = vmatprep.subr.mxu0 0.0
        %719 = vmatpush2.msra.mxu0 0.0
        %720 = vmatprep.mubr.f32.mxu0 0.0
        %721 = vmatmul.mubr.f32.gmra.mxu0 %v654
        %v722 = vpop.f32.mrf.mxu0
        %v723 = vadd.f32 0.0, %v722
        %v724 = vpop.f32.mrf.mxu0
        %725 = vdwg.mxu0
        %v727 = vsel %vm304, %v628, 0
        %729 = vmatprep.subr.mxu0 0.0
        %730 = vmatpush1.msra.mxu0 0.0
        %731 = vmatprep.subr.mxu0 0.0
        %732 = vmatpush1.msra.mxu0 0.0
        %733 = vmatprep.subr.mxu0 0.0
        %734 = vmatpush1.msra.mxu0 0.0
        %735 = vmatprep.subr.mxu0 0.0
        %736 = vmatpush1.msra.mxu0 0.0
        %737 = vmatprep.subr.mxu0 0.0
        %738 = vmatpush1.msra.mxu0 0.0
        %739 = vmatprep.subr.mxu0 0.0
        %740 = vmatpush1.msra.mxu0 0.0
        %741 = vmatprep.subr.mxu0 0.0
        %742 = vmatpush1.msra.mxu0 0.0
        %743 = vmatprep.subr.mxu0 0.0
        %744 = vmatpush1.msra.mxu0 0.0
        %745 = vmatprep.subr.mxu0 0.0
        %746 = vmatpush1.msra.mxu0 0.0
        %747 = vmatprep.subr.mxu0 0.0
        %748 = vmatpush1.msra.mxu0 0.0
        %749 = vmatprep.subr.mxu0 0.0
        %750 = vmatpush1.msra.mxu0 0.0
        %751 = vmatprep.subr.mxu0 0.0
        %752 = vmatpush1.msra.mxu0 0.0
        %753 = vmatprep.subr.mxu0 0.0
        %754 = vmatpush1.msra.mxu0 0.0
        %755 = vmatprep.subr.mxu0 0.0
        %756 = vmatpush1.msra.mxu0 0.0
        %757 = vmatprep.subr.mxu0 0.0
        %758 = vmatpush1.msra.mxu0 0.0
        %759 = vmatprep.subr.mxu0 0.0
        %760 = vmatpush1.msra.mxu0 %v301
        %761 = vmatprep.subr.mxu0 0.0
        %762 = vmatpush2.msra.mxu0 0.0
        %763 = vmatprep.subr.mxu0 0.0
        %764 = vmatpush2.msra.mxu0 0.0
        %765 = vmatprep.subr.mxu0 0.0
        %766 = vmatpush2.msra.mxu0 0.0
        %767 = vmatprep.subr.mxu0 0.0
        %768 = vmatpush2.msra.mxu0 0.0
        %769 = vmatprep.subr.mxu0 0.0
        %770 = vmatpush2.msra.mxu0 0.0
        %771 = vmatprep.subr.mxu0 0.0
        %772 = vmatpush2.msra.mxu0 0.0
        %773 = vmatprep.subr.mxu0 0.0
        %774 = vmatpush2.msra.mxu0 0.0
        %775 = vmatprep.subr.mxu0 0.0
        %776 = vmatpush2.msra.mxu0 0.0
        %777 = vmatprep.subr.mxu0 0.0
        %778 = vmatpush2.msra.mxu0 0.0
        %779 = vmatprep.subr.mxu0 0.0
        %780 = vmatpush2.msra.mxu0 0.0
        %781 = vmatprep.subr.mxu0 0.0
        %782 = vmatpush2.msra.mxu0 0.0
        %783 = vmatprep.subr.mxu0 0.0
        %784 = vmatpush2.msra.mxu0 0.0
        %785 = vmatprep.subr.mxu0 0.0
        %786 = vmatpush2.msra.mxu0 0.0
        %787 = vmatprep.subr.mxu0 0.0
        %788 = vmatpush2.msra.mxu0 0.0
        %789 = vmatprep.subr.mxu0 0.0
        %790 = vmatpush2.msra.mxu0 0.0
        %791 = vmatprep.subr.mxu0 0.0
        %792 = vmatpush2.msra.mxu0 0.0
        %793 = vmatprep.mubr.f32.mxu0 0.0
        %794 = vmatmul.mubr.f32.gmra.mxu0 %v727
        %v795 = vpop.f32.mrf.mxu0
        %v796 = vadd.f32 0.0, %v795
        %v797 = vpop.f32.mrf.mxu0
        %798 = vdwg.mxu0
        %v800 = vsel %vm304, %v630, 0
        %802 = vmatprep.subr.mxu0 0.0
        %803 = vmatpush1.msra.mxu0 0.0
        %804 = vmatprep.subr.mxu0 0.0
        %805 = vmatpush1.msra.mxu0 0.0
        %806 = vmatprep.subr.mxu0 0.0
        %807 = vmatpush1.msra.mxu0 0.0
        %808 = vmatprep.subr.mxu0 0.0
        %809 = vmatpush1.msra.mxu0 0.0
        %810 = vmatprep.subr.mxu0 0.0
        %811 = vmatpush1.msra.mxu0 0.0
        %812 = vmatprep.subr.mxu0 0.0
        %813 = vmatpush1.msra.mxu0 0.0
        %814 = vmatprep.subr.mxu0 0.0
        %815 = vmatpush1.msra.mxu0 0.0
        %816 = vmatprep.subr.mxu0 0.0
        %817 = vmatpush1.msra.mxu0 0.0
        %818 = vmatprep.subr.mxu0 0.0
        %819 = vmatpush1.msra.mxu0 0.0
        %820 = vmatprep.subr.mxu0 0.0
        %821 = vmatpush1.msra.mxu0 0.0
        %822 = vmatprep.subr.mxu0 0.0
        %823 = vmatpush1.msra.mxu0 0.0
        %824 = vmatprep.subr.mxu0 0.0
        %825 = vmatpush1.msra.mxu0 0.0
        %826 = vmatprep.subr.mxu0 0.0
        %827 = vmatpush1.msra.mxu0 0.0
        %828 = vmatprep.subr.mxu0 0.0
        %829 = vmatpush1.msra.mxu0 0.0
        %830 = vmatprep.subr.mxu0 0.0
        %831 = vmatpush1.msra.mxu0 0.0
        %832 = vmatprep.subr.mxu0 0.0
        %833 = vmatpush1.msra.mxu0 %v302
        %834 = vmatprep.subr.mxu0 0.0
        %835 = vmatpush2.msra.mxu0 0.0
        %836 = vmatprep.subr.mxu0 0.0
        %837 = vmatpush2.msra.mxu0 0.0
        %838 = vmatprep.subr.mxu0 0.0
        %839 = vmatpush2.msra.mxu0 0.0
        %840 = vmatprep.subr.mxu0 0.0
        %841 = vmatpush2.msra.mxu0 0.0
        %842 = vmatprep.subr.mxu0 0.0
        %843 = vmatpush2.msra.mxu0 0.0
        %844 = vmatprep.subr.mxu0 0.0
        %845 = vmatpush2.msra.mxu0 0.0
        %846 = vmatprep.subr.mxu0 0.0
        %847 = vmatpush2.msra.mxu0 0.0
        %848 = vmatprep.subr.mxu0 0.0
        %849 = vmatpush2.msra.mxu0 0.0
        %850 = vmatprep.subr.mxu0 0.0
        %851 = vmatpush2.msra.mxu0 0.0
        %852 = vmatprep.subr.mxu0 0.0
        %853 = vmatpush2.msra.mxu0 0.0
        %854 = vmatprep.subr.mxu0 0.0
        %855 = vmatpush2.msra.mxu0 0.0
        %856 = vmatprep.subr.mxu0 0.0
        %857 = vmatpush2.msra.mxu0 0.0
        %858 = vmatprep.subr.mxu0 0.0
        %859 = vmatpush2.msra.mxu0 0.0
        %860 = vmatprep.subr.mxu0 0.0
        %861 = vmatpush2.msra.mxu0 0.0
        %862 = vmatprep.subr.mxu0 0.0
        %863 = vmatpush2.msra.mxu0 0.0
        %864 = vmatprep.subr.mxu0 0.0
        %865 = vmatpush2.msra.mxu0 0.0
        %866 = vmatprep.mubr.f32.mxu0 0.0
        %867 = vmatmul.mubr.f32.gmra.mxu0 %v800
        %v868 = vpop.f32.mrf.mxu0
        %v869 = vadd.f32 0.0, %v868
        %v870 = vpop.f32.mrf.mxu0
        %871 = vdwg.mxu0
        %v873 = vsel %vm304, %v632, 0
        %875 = vmatprep.subr.mxu0 0.0
        %876 = vmatpush1.msra.mxu0 0.0
        %877 = vmatprep.subr.mxu0 0.0
        %878 = vmatpush1.msra.mxu0 0.0
        %879 = vmatprep.subr.mxu0 0.0
        %880 = vmatpush1.msra.mxu0 0.0
        %881 = vmatprep.subr.mxu0 0.0
        %882 = vmatpush1.msra.mxu0 0.0
        %883 = vmatprep.subr.mxu0 0.0
        %884 = vmatpush1.msra.mxu0 0.0
        %885 = vmatprep.subr.mxu0 0.0
        %886 = vmatpush1.msra.mxu0 0.0
        %887 = vmatprep.subr.mxu0 0.0
        %888 = vmatpush1.msra.mxu0 0.0
        %889 = vmatprep.subr.mxu0 0.0
        %890 = vmatpush1.msra.mxu0 0.0
        %891 = vmatprep.subr.mxu0 0.0
        %892 = vmatpush1.msra.mxu0 0.0
        %893 = vmatprep.subr.mxu0 0.0
        %894 = vmatpush1.msra.mxu0 0.0
        %895 = vmatprep.subr.mxu0 0.0
        %896 = vmatpush1.msra.mxu0 0.0
        %897 = vmatprep.subr.mxu0 0.0
        %898 = vmatpush1.msra.mxu0 0.0
        %899 = vmatprep.subr.mxu0 0.0
        %900 = vmatpush1.msra.mxu0 0.0
        %901 = vmatprep.subr.mxu0 0.0
        %902 = vmatpush1.msra.mxu0 0.0
        %903 = vmatprep.subr.mxu0 0.0
        %904 = vmatpush1.msra.mxu0 0.0
        %905 = vmatprep.subr.mxu0 0.0
        %906 = vmatpush1.msra.mxu0 %v303
        %907 = vmatprep.subr.mxu0 0.0
        %908 = vmatpush2.msra.mxu0 0.0
        %909 = vmatprep.subr.mxu0 0.0
        %910 = vmatpush2.msra.mxu0 0.0
        %911 = vmatprep.subr.mxu0 0.0
        %912 = vmatpush2.msra.mxu0 0.0
        %913 = vmatprep.subr.mxu0 0.0
        %914 = vmatpush2.msra.mxu0 0.0
        %915 = vmatprep.subr.mxu0 0.0
        %916 = vmatpush2.msra.mxu0 0.0
        %917 = vmatprep.subr.mxu0 0.0
        %918 = vmatpush2.msra.mxu0 0.0
        %919 = vmatprep.subr.mxu0 0.0
        %920 = vmatpush2.msra.mxu0 0.0
        %921 = vmatprep.subr.mxu0 0.0
        %922 = vmatpush2.msra.mxu0 0.0
        %923 = vmatprep.subr.mxu0 0.0
        %924 = vmatpush2.msra.mxu0 0.0
        %925 = vmatprep.subr.mxu0 0.0
        %926 = vmatpush2.msra.mxu0 0.0
        %927 = vmatprep.subr.mxu0 0.0
        %928 = vmatpush2.msra.mxu0 0.0
        %929 = vmatprep.subr.mxu0 0.0
        %930 = vmatpush2.msra.mxu0 0.0
        %931 = vmatprep.subr.mxu0 0.0
        %932 = vmatpush2.msra.mxu0 0.0
        %933 = vmatprep.subr.mxu0 0.0
        %934 = vmatpush2.msra.mxu0 0.0
        %935 = vmatprep.subr.mxu0 0.0
        %936 = vmatpush2.msra.mxu0 0.0
        %937 = vmatprep.subr.mxu0 0.0
        %938 = vmatpush2.msra.mxu0 0.0
        %939 = vmatprep.mubr.f32.mxu0 0.0
        %940 = vmatmul.mubr.f32.gmra.mxu0 %v873
        %v941 = vpop.f32.mrf.mxu0
        %v942 = vadd.f32 0.0, %v941
        %v943 = vpop.f32.mrf.mxu0
        %944 = vdwg.mxu0
        %v945 = vmul.f32 %v723, %v646
        %v946 = vmul.f32 %v796, %v648
        %v947 = vmul.f32 %v869, %v650
        %v948 = vmul.f32 %v942, %v652
        %949 = vst.msk [vmem:[%s285] sm:$0xff] %vm304, %v945
        %950 = vst.msk [vmem:[%s285 + $0x8] sm:$0xff] %vm304, %v946
        %951 = vst.msk [vmem:[%s285 + $0x10] sm:$0xff] %vm304, %v947
        %952 = vst.msk [vmem:[%s285 + $0x18] sm:$0xff] %vm304, %v948
        %953 = vxpose.xlu0.b32.start [1/16] %v646, 128
        %954 = vxpose.xlu0.b32.cont [2/16] 0.0, 128
        %955 = vxpose.xlu0.b32.cont [3/16] 0.0, 128
        %956 = vxpose.xlu0.b32.cont [4/16] 0.0, 128
        %957 = vxpose.xlu0.b32.cont [5/16] 0.0, 128
        %958 = vxpose.xlu0.b32.cont [6/16] 0.0, 128
        %959 = vxpose.xlu0.b32.cont [7/16] 0.0, 128
        %960 = vxpose.xlu0.b32.cont [8/16] 0.0, 128
        %961 = vxpose.xlu0.b32.cont [9/16] 0.0, 128
        %962 = vxpose.xlu0.b32.cont [10/16] 0.0, 128
        %963 = vxpose.xlu0.b32.cont [11/16] 0.0, 128
        %964 = vxpose.xlu0.b32.cont [12/16] 0.0, 128
        %965 = vxpose.xlu0.b32.cont [13/16] 0.0, 128
        %966 = vxpose.xlu0.b32.cont [14/16] 0.0, 128
        %967 = vxpose.xlu0.b32.cont [15/16] 0.0, 128
        %968 = vxpose.xlu0.b32.end [16/16] 0.0, 128
        %v969 = vpop.trf.xlu0
        %v970 = vpop.trf.xlu0
        %v971 = vpop.trf.xlu0
        %v972 = vpop.trf.xlu0
        %v973 = vpop.trf.xlu0
        %v974 = vpop.trf.xlu0
        %v975 = vpop.trf.xlu0
        %v976 = vpop.trf.xlu0
        %v977 = vpop.trf.xlu0
        %v978 = vpop.trf.xlu0
        %v979 = vpop.trf.xlu0
        %v980 = vpop.trf.xlu0
        %v981 = vpop.trf.xlu0
        %v982 = vpop.trf.xlu0
        %v983 = vpop.trf.xlu0
        %v984 = vpop.trf.xlu0
        %v986 = vsel %vm304, %v969, 0
        %988 = vmatprep.subr.mxu0 0.0
        %989 = vmatpush1.msra.mxu0 0.0
        %990 = vmatprep.subr.mxu0 0.0
        %991 = vmatpush1.msra.mxu0 0.0
        %992 = vmatprep.subr.mxu0 0.0
        %993 = vmatpush1.msra.mxu0 0.0
        %994 = vmatprep.subr.mxu0 0.0
        %995 = vmatpush1.msra.mxu0 0.0
        %996 = vmatprep.subr.mxu0 0.0
        %997 = vmatpush1.msra.mxu0 0.0
        %998 = vmatprep.subr.mxu0 0.0
        %999 = vmatpush1.msra.mxu0 0.0
        %1000 = vmatprep.subr.mxu0 0.0
        %1001 = vmatpush1.msra.mxu0 0.0
        %1002 = vmatprep.subr.mxu0 0.0
        %1003 = vmatpush1.msra.mxu0 0.0
        %1004 = vmatprep.subr.mxu0 0.0
        %1005 = vmatpush1.msra.mxu0 0.0
        %1006 = vmatprep.subr.mxu0 0.0
        %1007 = vmatpush1.msra.mxu0 0.0
        %1008 = vmatprep.subr.mxu0 0.0
        %1009 = vmatpush1.msra.mxu0 0.0
        %1010 = vmatprep.subr.mxu0 0.0
        %1011 = vmatpush1.msra.mxu0 0.0
        %1012 = vmatprep.subr.mxu0 0.0
        %1013 = vmatpush1.msra.mxu0 0.0
        %1014 = vmatprep.subr.mxu0 0.0
        %1015 = vmatpush1.msra.mxu0 0.0
        %1016 = vmatprep.subr.mxu0 0.0
        %1017 = vmatpush1.msra.mxu0 0.0
        %1018 = vmatprep.subr.mxu0 0.0
        %1019 = vmatpush1.msra.mxu0 %v626
        %1020 = vmatprep.subr.mxu0 0.0
        %1021 = vmatpush2.msra.mxu0 0.0
        %1022 = vmatprep.subr.mxu0 0.0
        %1023 = vmatpush2.msra.mxu0 0.0
        %1024 = vmatprep.subr.mxu0 0.0
        %1025 = vmatpush2.msra.mxu0 0.0
        %1026 = vmatprep.subr.mxu0 0.0
        %1027 = vmatpush2.msra.mxu0 0.0
        %1028 = vmatprep.subr.mxu0 0.0
        %1029 = vmatpush2.msra.mxu0 0.0
        %1030 = vmatprep.subr.mxu0 0.0
        %1031 = vmatpush2.msra.mxu0 0.0
        %1032 = vmatprep.subr.mxu0 0.0
        %1033 = vmatpush2.msra.mxu0 0.0
        %1034 = vmatprep.subr.mxu0 0.0
        %1035 = vmatpush2.msra.mxu0 0.0
        %1036 = vmatprep.subr.mxu0 0.0
        %1037 = vmatpush2.msra.mxu0 0.0
        %1038 = vmatprep.subr.mxu0 0.0
        %1039 = vmatpush2.msra.mxu0 0.0
        %1040 = vmatprep.subr.mxu0 0.0
        %1041 = vmatpush2.msra.mxu0 0.0
        %1042 = vmatprep.subr.mxu0 0.0
        %1043 = vmatpush2.msra.mxu0 0.0
        %1044 = vmatprep.subr.mxu0 0.0
        %1045 = vmatpush2.msra.mxu0 0.0
        %1046 = vmatprep.subr.mxu0 0.0
        %1047 = vmatpush2.msra.mxu0 0.0
        %1048 = vmatprep.subr.mxu0 0.0
        %1049 = vmatpush2.msra.mxu0 0.0
        %1050 = vmatprep.subr.mxu0 0.0
        %1051 = vmatpush2.msra.mxu0 0.0
        %1052 = vmatprep.mubr.f32.mxu0 0.0
        %1053 = vmatmul.mubr.f32.gmra.mxu0 %v986
        %v1054 = vpop.f32.mrf.mxu0
        %v1055 = vadd.f32 0.0, %v1054
        %v1056 = vpop.f32.mrf.mxu0
        %1057 = vdwg.mxu0
        %1058 = vxpose.xlu0.b32.start [1/16] %v648, 128
        %1059 = vxpose.xlu0.b32.cont [2/16] 0.0, 128
        %1060 = vxpose.xlu0.b32.cont [3/16] 0.0, 128
        %1061 = vxpose.xlu0.b32.cont [4/16] 0.0, 128
        %1062 = vxpose.xlu0.b32.cont [5/16] 0.0, 128
        %1063 = vxpose.xlu0.b32.cont [6/16] 0.0, 128
        %1064 = vxpose.xlu0.b32.cont [7/16] 0.0, 128
        %1065 = vxpose.xlu0.b32.cont [8/16] 0.0, 128
        %1066 = vxpose.xlu0.b32.cont [9/16] 0.0, 128
        %1067 = vxpose.xlu0.b32.cont [10/16] 0.0, 128
        %1068 = vxpose.xlu0.b32.cont [11/16] 0.0, 128
        %1069 = vxpose.xlu0.b32.cont [12/16] 0.0, 128
        %1070 = vxpose.xlu0.b32.cont [13/16] 0.0, 128
        %1071 = vxpose.xlu0.b32.cont [14/16] 0.0, 128
        %1072 = vxpose.xlu0.b32.cont [15/16] 0.0, 128
        %1073 = vxpose.xlu0.b32.end [16/16] 0.0, 128
        %v1074 = vpop.trf.xlu0
        %v1075 = vpop.trf.xlu0
        %v1076 = vpop.trf.xlu0
        %v1077 = vpop.trf.xlu0
        %v1078 = vpop.trf.xlu0
        %v1079 = vpop.trf.xlu0
        %v1080 = vpop.trf.xlu0
        %v1081 = vpop.trf.xlu0
        %v1082 = vpop.trf.xlu0
        %v1083 = vpop.trf.xlu0
        %v1084 = vpop.trf.xlu0
        %v1085 = vpop.trf.xlu0
        %v1086 = vpop.trf.xlu0
        %v1087 = vpop.trf.xlu0
        %v1088 = vpop.trf.xlu0
        %v1089 = vpop.trf.xlu0
        %v1091 = vsel %vm304, %v1074, 0
        %1093 = vmatprep.subr.mxu0 0.0
        %1094 = vmatpush1.msra.mxu0 0.0
        %1095 = vmatprep.subr.mxu0 0.0
        %1096 = vmatpush1.msra.mxu0 0.0
        %1097 = vmatprep.subr.mxu0 0.0
        %1098 = vmatpush1.msra.mxu0 0.0
        %1099 = vmatprep.subr.mxu0 0.0
        %1100 = vmatpush1.msra.mxu0 0.0
        %1101 = vmatprep.subr.mxu0 0.0
        %1102 = vmatpush1.msra.mxu0 0.0
        %1103 = vmatprep.subr.mxu0 0.0
        %1104 = vmatpush1.msra.mxu0 0.0
        %1105 = vmatprep.subr.mxu0 0.0
        %1106 = vmatpush1.msra.mxu0 0.0
        %1107 = vmatprep.subr.mxu0 0.0
        %1108 = vmatpush1.msra.mxu0 0.0
        %1109 = vmatprep.subr.mxu0 0.0
        %1110 = vmatpush1.msra.mxu0 0.0
        %1111 = vmatprep.subr.mxu0 0.0
        %1112 = vmatpush1.msra.mxu0 0.0
        %1113 = vmatprep.subr.mxu0 0.0
        %1114 = vmatpush1.msra.mxu0 0.0
        %1115 = vmatprep.subr.mxu0 0.0
        %1116 = vmatpush1.msra.mxu0 0.0
        %1117 = vmatprep.subr.mxu0 0.0
        %1118 = vmatpush1.msra.mxu0 0.0
        %1119 = vmatprep.subr.mxu0 0.0
        %1120 = vmatpush1.msra.mxu0 0.0
        %1121 = vmatprep.subr.mxu0 0.0
        %1122 = vmatpush1.msra.mxu0 0.0
        %1123 = vmatprep.subr.mxu0 0.0
        %1124 = vmatpush1.msra.mxu0 %v628
        %1125 = vmatprep.subr.mxu0 0.0
        %1126 = vmatpush2.msra.mxu0 0.0
        %1127 = vmatprep.subr.mxu0 0.0
        %1128 = vmatpush2.msra.mxu0 0.0
        %1129 = vmatprep.subr.mxu0 0.0
        %1130 = vmatpush2.msra.mxu0 0.0
        %1131 = vmatprep.subr.mxu0 0.0
        %1132 = vmatpush2.msra.mxu0 0.0
        %1133 = vmatprep.subr.mxu0 0.0
        %1134 = vmatpush2.msra.mxu0 0.0
        %1135 = vmatprep.subr.mxu0 0.0
        %1136 = vmatpush2.msra.mxu0 0.0
        %1137 = vmatprep.subr.mxu0 0.0
        %1138 = vmatpush2.msra.mxu0 0.0
        %1139 = vmatprep.subr.mxu0 0.0
        %1140 = vmatpush2.msra.mxu0 0.0
        %1141 = vmatprep.subr.mxu0 0.0
        %1142 = vmatpush2.msra.mxu0 0.0
        %1143 = vmatprep.subr.mxu0 0.0
        %1144 = vmatpush2.msra.mxu0 0.0
        %1145 = vmatprep.subr.mxu0 0.0
        %1146 = vmatpush2.msra.mxu0 0.0
        %1147 = vmatprep.subr.mxu0 0.0
        %1148 = vmatpush2.msra.mxu0 0.0
        %1149 = vmatprep.subr.mxu0 0.0
        %1150 = vmatpush2.msra.mxu0 0.0
        %1151 = vmatprep.subr.mxu0 0.0
        %1152 = vmatpush2.msra.mxu0 0.0
        %1153 = vmatprep.subr.mxu0 0.0
        %1154 = vmatpush2.msra.mxu0 0.0
        %1155 = vmatprep.subr.mxu0 0.0
        %1156 = vmatpush2.msra.mxu0 0.0
        %1157 = vmatprep.mubr.f32.mxu0 0.0
        %1158 = vmatmul.mubr.f32.gmra.mxu0 %v1091
        %v1159 = vpop.f32.mrf.mxu0
        %v1160 = vadd.f32 0.0, %v1159
        %v1161 = vpop.f32.mrf.mxu0
        %1162 = vdwg.mxu0
        %1163 = vxpose.xlu0.b32.start [1/16] %v650, 128
        %1164 = vxpose.xlu0.b32.cont [2/16] 0.0, 128
        %1165 = vxpose.xlu0.b32.cont [3/16] 0.0, 128
        %1166 = vxpose.xlu0.b32.cont [4/16] 0.0, 128
        %1167 = vxpose.xlu0.b32.cont [5/16] 0.0, 128
        %1168 = vxpose.xlu0.b32.cont [6/16] 0.0, 128
        %1169 = vxpose.xlu0.b32.cont [7/16] 0.0, 128
        %1170 = vxpose.xlu0.b32.cont [8/16] 0.0, 128
        %1171 = vxpose.xlu0.b32.cont [9/16] 0.0, 128
        %1172 = vxpose.xlu0.b32.cont [10/16] 0.0, 128
        %1173 = vxpose.xlu0.b32.cont [11/16] 0.0, 128
        %1174 = vxpose.xlu0.b32.cont [12/16] 0.0, 128
        %1175 = vxpose.xlu0.b32.cont [13/16] 0.0, 128
        %1176 = vxpose.xlu0.b32.cont [14/16] 0.0, 128
        %1177 = vxpose.xlu0.b32.cont [15/16] 0.0, 128
        %1178 = vxpose.xlu0.b32.end [16/16] 0.0, 128
        %v1179 = vpop.trf.xlu0
        %v1180 = vpop.trf.xlu0
        %v1181 = vpop.trf.xlu0
        %v1182 = vpop.trf.xlu0
        %v1183 = vpop.trf.xlu0
        %v1184 = vpop.trf.xlu0
        %v1185 = vpop.trf.xlu0
        %v1186 = vpop.trf.xlu0
        %v1187 = vpop.trf.xlu0
        %v1188 = vpop.trf.xlu0
        %v1189 = vpop.trf.xlu0
        %v1190 = vpop.trf.xlu0
        %v1191 = vpop.trf.xlu0
        %v1192 = vpop.trf.xlu0
        %v1193 = vpop.trf.xlu0
        %v1194 = vpop.trf.xlu0
        %v1196 = vsel %vm304, %v1179, 0
        %1198 = vmatprep.subr.mxu0 0.0
        %1199 = vmatpush1.msra.mxu0 0.0
        %1200 = vmatprep.subr.mxu0 0.0
        %1201 = vmatpush1.msra.mxu0 0.0
        %1202 = vmatprep.subr.mxu0 0.0
        %1203 = vmatpush1.msra.mxu0 0.0
        %1204 = vmatprep.subr.mxu0 0.0
        %1205 = vmatpush1.msra.mxu0 0.0
        %1206 = vmatprep.subr.mxu0 0.0
        %1207 = vmatpush1.msra.mxu0 0.0
        %1208 = vmatprep.subr.mxu0 0.0
        %1209 = vmatpush1.msra.mxu0 0.0
        %1210 = vmatprep.subr.mxu0 0.0
        %1211 = vmatpush1.msra.mxu0 0.0
        %1212 = vmatprep.subr.mxu0 0.0
        %1213 = vmatpush1.msra.mxu0 0.0
        %1214 = vmatprep.subr.mxu0 0.0
        %1215 = vmatpush1.msra.mxu0 0.0
        %1216 = vmatprep.subr.mxu0 0.0
        %1217 = vmatpush1.msra.mxu0 0.0
        %1218 = vmatprep.subr.mxu0 0.0
        %1219 = vmatpush1.msra.mxu0 0.0
        %1220 = vmatprep.subr.mxu0 0.0
        %1221 = vmatpush1.msra.mxu0 0.0
        %1222 = vmatprep.subr.mxu0 0.0
        %1223 = vmatpush1.msra.mxu0 0.0
        %1224 = vmatprep.subr.mxu0 0.0
        %1225 = vmatpush1.msra.mxu0 0.0
        %1226 = vmatprep.subr.mxu0 0.0
        %1227 = vmatpush1.msra.mxu0 0.0
        %1228 = vmatprep.subr.mxu0 0.0
        %1229 = vmatpush1.msra.mxu0 %v630
        %1230 = vmatprep.subr.mxu0 0.0
        %1231 = vmatpush2.msra.mxu0 0.0
        %1232 = vmatprep.subr.mxu0 0.0
        %1233 = vmatpush2.msra.mxu0 0.0
        %1234 = vmatprep.subr.mxu0 0.0
        %1235 = vmatpush2.msra.mxu0 0.0
        %1236 = vmatprep.subr.mxu0 0.0
        %1237 = vmatpush2.msra.mxu0 0.0
        %1238 = vmatprep.subr.mxu0 0.0
        %1239 = vmatpush2.msra.mxu0 0.0
        %1240 = vmatprep.subr.mxu0 0.0
        %1241 = vmatpush2.msra.mxu0 0.0
        %1242 = vmatprep.subr.mxu0 0.0
        %1243 = vmatpush2.msra.mxu0 0.0
        %1244 = vmatprep.subr.mxu0 0.0
        %1245 = vmatpush2.msra.mxu0 0.0
        %1246 = vmatprep.subr.mxu0 0.0
        %1247 = vmatpush2.msra.mxu0 0.0
        %1248 = vmatprep.subr.mxu0 0.0
        %1249 = vmatpush2.msra.mxu0 0.0
        %1250 = vmatprep.subr.mxu0 0.0
        %1251 = vmatpush2.msra.mxu0 0.0
        %1252 = vmatprep.subr.mxu0 0.0
        %1253 = vmatpush2.msra.mxu0 0.0
        %1254 = vmatprep.subr.mxu0 0.0
        %1255 = vmatpush2.msra.mxu0 0.0
        %1256 = vmatprep.subr.mxu0 0.0
        %1257 = vmatpush2.msra.mxu0 0.0
        %1258 = vmatprep.subr.mxu0 0.0
        %1259 = vmatpush2.msra.mxu0 0.0
        %1260 = vmatprep.subr.mxu0 0.0
        %1261 = vmatpush2.msra.mxu0 0.0
        %1262 = vmatprep.mubr.f32.mxu0 0.0
        %1263 = vmatmul.mubr.f32.gmra.mxu0 %v1196
        %v1264 = vpop.f32.mrf.mxu0
        %v1265 = vadd.f32 0.0, %v1264
        %v1266 = vpop.f32.mrf.mxu0
        %1267 = vdwg.mxu0
        %1268 = vxpose.xlu0.b32.start [1/16] %v652, 128
        %1269 = vxpose.xlu0.b32.cont [2/16] 0.0, 128
        %1270 = vxpose.xlu0.b32.cont [3/16] 0.0, 128
        %1271 = vxpose.xlu0.b32.cont [4/16] 0.0, 128
        %1272 = vxpose.xlu0.b32.cont [5/16] 0.0, 128
        %1273 = vxpose.xlu0.b32.cont [6/16] 0.0, 128
        %1274 = vxpose.xlu0.b32.cont [7/16] 0.0, 128
        %1275 = vxpose.xlu0.b32.cont [8/16] 0.0, 128
        %1276 = vxpose.xlu0.b32.cont [9/16] 0.0, 128
        %1277 = vxpose.xlu0.b32.cont [10/16] 0.0, 128
        %1278 = vxpose.xlu0.b32.cont [11/16] 0.0, 128
        %1279 = vxpose.xlu0.b32.cont [12/16] 0.0, 128
        %1280 = vxpose.xlu0.b32.cont [13/16] 0.0, 128
        %1281 = vxpose.xlu0.b32.cont [14/16] 0.0, 128
        %1282 = vxpose.xlu0.b32.cont [15/16] 0.0, 128
        %1283 = vxpose.xlu0.b32.end [16/16] 0.0, 128
        %v1284 = vpop.trf.xlu0
        %v1285 = vpop.trf.xlu0
        %v1286 = vpop.trf.xlu0
        %v1287 = vpop.trf.xlu0
        %v1288 = vpop.trf.xlu0
        %v1289 = vpop.trf.xlu0
        %v1290 = vpop.trf.xlu0
        %v1291 = vpop.trf.xlu0
        %v1292 = vpop.trf.xlu0
        %v1293 = vpop.trf.xlu0
        %v1294 = vpop.trf.xlu0
        %v1295 = vpop.trf.xlu0
        %v1296 = vpop.trf.xlu0
        %v1297 = vpop.trf.xlu0
        %v1298 = vpop.trf.xlu0
        %v1299 = vpop.trf.xlu0
        %v1301 = vsel %vm304, %v1284, 0
        %1303 = vmatprep.subr.mxu0 0.0
        %1304 = vmatpush1.msra.mxu0 0.0
        %1305 = vmatprep.subr.mxu0 0.0
        %1306 = vmatpush1.msra.mxu0 0.0
        %1307 = vmatprep.subr.mxu0 0.0
        %1308 = vmatpush1.msra.mxu0 0.0
        %1309 = vmatprep.subr.mxu0 0.0
        %1310 = vmatpush1.msra.mxu0 0.0
        %1311 = vmatprep.subr.mxu0 0.0
        %1312 = vmatpush1.msra.mxu0 0.0
        %1313 = vmatprep.subr.mxu0 0.0
        %1314 = vmatpush1.msra.mxu0 0.0
        %1315 = vmatprep.subr.mxu0 0.0
        %1316 = vmatpush1.msra.mxu0 0.0
        %1317 = vmatprep.subr.mxu0 0.0
        %1318 = vmatpush1.msra.mxu0 0.0
        %1319 = vmatprep.subr.mxu0 0.0
        %1320 = vmatpush1.msra.mxu0 0.0
        %1321 = vmatprep.subr.mxu0 0.0
        %1322 = vmatpush1.msra.mxu0 0.0
        %1323 = vmatprep.subr.mxu0 0.0
        %1324 = vmatpush1.msra.mxu0 0.0
        %1325 = vmatprep.subr.mxu0 0.0
        %1326 = vmatpush1.msra.mxu0 0.0
        %1327 = vmatprep.subr.mxu0 0.0
        %1328 = vmatpush1.msra.mxu0 0.0
        %1329 = vmatprep.subr.mxu0 0.0
        %1330 = vmatpush1.msra.mxu0 0.0
        %1331 = vmatprep.subr.mxu0 0.0
        %1332 = vmatpush1.msra.mxu0 0.0
        %1333 = vmatprep.subr.mxu0 0.0
        %1334 = vmatpush1.msra.mxu0 %v632
        %1335 = vmatprep.subr.mxu0 0.0
        %1336 = vmatpush2.msra.mxu0 0.0
        %1337 = vmatprep.subr.mxu0 0.0
        %1338 = vmatpush2.msra.mxu0 0.0
        %1339 = vmatprep.subr.mxu0 0.0
        %1340 = vmatpush2.msra.mxu0 0.0
        %1341 = vmatprep.subr.mxu0 0.0
        %1342 = vmatpush2.msra.mxu0 0.0
        %1343 = vmatprep.subr.mxu0 0.0
        %1344 = vmatpush2.msra.mxu0 0.0
        %1345 = vmatprep.subr.mxu0 0.0
        %1346 = vmatpush2.msra.mxu0 0.0
        %1347 = vmatprep.subr.mxu0 0.0
        %1348 = vmatpush2.msra.mxu0 0.0
        %1349 = vmatprep.subr.mxu0 0.0
        %1350 = vmatpush2.msra.mxu0 0.0
        %1351 = vmatprep.subr.mxu0 0.0
        %1352 = vmatpush2.msra.mxu0 0.0
        %1353 = vmatprep.subr.mxu0 0.0
        %1354 = vmatpush2.msra.mxu0 0.0
        %1355 = vmatprep.subr.mxu0 0.0
        %1356 = vmatpush2.msra.mxu0 0.0
        %1357 = vmatprep.subr.mxu0 0.0
        %1358 = vmatpush2.msra.mxu0 0.0
        %1359 = vmatprep.subr.mxu0 0.0
        %1360 = vmatpush2.msra.mxu0 0.0
        %1361 = vmatprep.subr.mxu0 0.0
        %1362 = vmatpush2.msra.mxu0 0.0
        %1363 = vmatprep.subr.mxu0 0.0
        %1364 = vmatpush2.msra.mxu0 0.0
        %1365 = vmatprep.subr.mxu0 0.0
        %1366 = vmatpush2.msra.mxu0 0.0
        %1367 = vmatprep.mubr.f32.mxu0 0.0
        %1368 = vmatmul.mubr.f32.gmra.mxu0 %v1301
        %v1369 = vpop.f32.mrf.mxu0
        %v1370 = vadd.f32 0.0, %v1369
        %v1371 = vpop.f32.mrf.mxu0
        %1372 = vdwg.mxu0
        %p1373 = scmp.eq.s32.totalorder %s24, 0
        // Predicated region
        $region33: #{_lambda_.4} parent=31 // pred_check
          %p1374 = pneg %p1373
        $region34: #{_lambda_.4} parent=31 // pred_check_branch
          %1376 = sbr.rel (%p1374) target = $region36
        $region35: #{_lambda_.4} parent=31 // pred_region
          %vm1377 = vcmask 57344
          %1378 = vst.msk [vmem:[%s256] sm:$0x1] %vm1377, 0.0
          %1379 = vst.msk [vmem:[%s256 + $0x1] sm:$0x1] %vm1377, 0.0
          %1380 = vst.msk [vmem:[%s256 + $0x2] sm:$0x1] %vm1377, 0.0
          %1381 = vst.msk [vmem:[%s256 + $0x3] sm:$0x1] %vm1377, 0.0
        $region36: #{_lambda_.4} parent=31 // pred_fallthru
          _
        %v1382 = vld [vmem:[%s256] sm:$0x1]
        %v1383 = vld [vmem:[%s256 + $0x1] sm:$0x1]
        %v1384 = vld [vmem:[%s256 + $0x2] sm:$0x1]
        %v1385 = vld [vmem:[%s256 + $0x3] sm:$0x1]
        %v1386 = vmul.f32 %v1055, 0.25
        %v1387 = vmul.f32 %v1160, 0.25
        %v1388 = vmul.f32 %v1265, 0.25
        %v1389 = vmul.f32 %v1370, 0.25
        %v1390 = vadd.f32 %v1382, %v1386
        %v1391 = vadd.f32 %v1383, %v1387
        %v1392 = vadd.f32 %v1384, %v1388
        %v1393 = vadd.f32 %v1385, %v1389
        %vm1394 = vcmask 57344
        %1395 = vst.msk [vmem:[%s256] sm:$0x1] %vm1394, %v1390
        %1396 = vst.msk [vmem:[%s256 + $0x1] sm:$0x1] %vm1394, %v1391
        %1397 = vst.msk [vmem:[%s256 + $0x2] sm:$0x1] %vm1394, %v1392
        %1398 = vst.msk [vmem:[%s256 + $0x3] sm:$0x1] %vm1394, %v1393
        %s1399 = smul.u32 4, %s23
        %p1400 = scmp.lt.s32.totalorder %s1399, 7
        %s1401 = scalar_select %p1400, %s1399, 7
        %p1402 = scmp.lt.s32.totalorder %s24, 0
        %s1403 = scalar_select %p1402, %s24, 0
        %s1404 = sadd.s32 %s1403, %s1401
        %s1405 = smul.addr %s1404, 8
        %s1406 = scalar_lea.vmem %s3, %s1405
        %s1407 = sand.u32 %s147, 1
        %s1408 = scalar_lea.sflag [#allocation3], %s1407
        %s1409 = sand.u32 %s147, 1
        %s1410 = smul.addr %s1409, 4
        %s1411 = scalar_lea.vmem [#allocation2], %s1410
        // Predicated region
        $region37: #{_lambda_.4} parent=31 // pred_check
          %p1412 = pneg %p131
        $region38: #{_lambda_.4} parent=31 // pred_check_branch
          %1414 = sbr.rel (%p1412) target = $region40
        $region39: #{_lambda_.4} parent=31 // pred_region
          %s1415 = smul.u32 4, %s23
        $region40: #{_lambda_.4} parent=31 // pred_fallthru
          _
        // Predicated region
        $region41: #{_lambda_.4} parent=31 // pred_check
          %p1416 = pneg %p157
        $region42: #{_lambda_.4} parent=31 // pred_check_branch
          %1418 = sbr.rel (%p1416) target = $region44
        $region43: #{_lambda_.4} parent=31 // pred_region
          %s1419 = smul.u32 4, %s23
          %s1421 = ssub.s32 64, 64
          %1422 = vsyncadd %s1408, %s1421
          %s1423 = smul.addr %s1419, 16
          %s1424 = scalar_lea.hbm %s4, %s1423
          %s1425 = sshll.u32 %s1411, 4
          %s1426 = int_to_ptr.vmem [resolvable:$true] %s1425
          %1431 = dma.vmem_to_hbm [thread:$0]  %s1426, 64, %s1424, %s1408, 16, 16, 1
        $region44: #{_lambda_.4} parent=31 // pred_fallthru
          _
      $region32: #{_lambda_.4} parent=5 // pred_fallthru
        _
      %p1432 = scmp.le.s32.totalorder 2, %s14
      // Predicated region
      $region45: #{_lambda_.4} parent=5 // pred_check
        %p1433 = pneg %p1432
      $region46: #{_lambda_.4} parent=5 // pred_check_branch
        %1435 = sbr.rel (%p1433) target = $region48
      $region47: #{_lambda_.4} parent=5 // pred_region
        %s1436 = ssub.s32 %s14, 2
        // Predicated region
        $region49: #{_lambda_.4} parent=47 // pred_check
          %p1437 = pneg %p137
        $region50: #{_lambda_.4} parent=47 // pred_check_branch
          %1439 = sbr.rel (%p1437) target = $region52
        $region51: #{_lambda_.4} parent=47 // pred_region
          %s1440 = smul.u32 4, %s25
          %p1441 = scmp.lt.s32.totalorder %s1440, 7
          %s1442 = scalar_select %p1441, %s1440, 7
          %p1443 = scmp.lt.s32.totalorder %s26, 0
          %s1444 = scalar_select %p1443, %s26, 0
          %s1445 = sadd.s32 %s1444, %s1442
          %s1446 = smul.addr %s1445, 8
          %s1447 = scalar_lea.vmem %s3, %s1446
        $region52: #{_lambda_.4} parent=47 // pred_fallthru
          _
        // Predicated region
        $region53: #{_lambda_.4} parent=47 // pred_check
          %p1448 = pneg %p163
        $region54: #{_lambda_.4} parent=47 // pred_check_branch
          %1450 = sbr.rel (%p1448) target = $region56
        $region55: #{_lambda_.4} parent=47 // pred_region
          %s1451 = sand.u32 %s148, 1
          %s1452 = scalar_lea.sflag [#allocation3], %s1451
          %s1453 = sand.u32 %s148, 1
          %s1454 = smul.addr %s1453, 4
          %s1455 = scalar_lea.vmem [#allocation2], %s1454
          %1456 = dma.done %s1452, 64
        $region56: #{_lambda_.4} parent=47 // pred_fallthru
          _
      $region48: #{_lambda_.4} parent=5 // pred_fallthru
        _
    $region6: #{_lambda_.4} parent=1 // loop_footer
      %s18 = sadd.s32 1, %s14
    $region7: #{_lambda_.4} parent=1 // loop_footer_branch
      %13 = sbr.rel target = $region3
    $region8: #{_lambda_.4} parent=1 // loop_exit
      _
    %1457 = vsyncpa [#allocation3], 1
    %s1458 = scalar_lea.sflag [#allocation3], 1
    %1459 = vsyncpa %s1458, 1

</llo_original>
